<compile_context>
chip_gen: v5e
topology: v5e:2x2
jax: 0.10.0
libtpu: 0.0.40
codegen_flags: <defaults>
</compile_context>

<pallas_src>
import functools
import math

import numpy as np
import jax
import jax.numpy as jnp
from jax import lax
from jax.experimental import pallas as pl
from jax.experimental.pallas import tpu as pltpu


def _round_up(v, m):
    return ((v + m - 1) // m) * m


def _mxu_k_depth():
    """MXU contraction depth: 256 on v6e/v7x, 128 on earlier generations."""
    try:
        kind = jax.devices()[0].device_kind.lower()
    except Exception:
        return 256
    for tag in ("v2", "v3", "v4", "v5"):
        if tag in kind:
            return 128
    return 256


# --------------------------------------------------------------------------
# Deterministic CQT kernel bank (replicates nnAudio create_cqt_kernels with
# norm=False, window='hann', gamma=0).  Pure numpy "parameter init" glue.
# --------------------------------------------------------------------------
def create_cqt_kernels(Q, fs, fmin, n_bins, bins_per_octave):
    fft_len = int(2 ** np.ceil(np.log2(np.ceil(Q * fs / fmin))))
    freqs = fmin * 2.0 ** (np.arange(n_bins, dtype=np.float64) / bins_per_octave)
    assert freqs[-1] <= fs / 2.0, "top CQT bin above Nyquist"
    lengths = np.ceil(Q * fs / freqs)
    kern = np.zeros((n_bins, fft_len), dtype=np.complex128)
    for k in range(n_bins):
        freq = freqs[k]
        l = int(np.ceil(Q * fs / freq))
        if l % 2 == 1:
            start = int(np.ceil(fft_len / 2.0 - l / 2.0)) - 1
        else:
            start = int(np.ceil(fft_len / 2.0 - l / 2.0))
        # periodic ('fftbins=True') Hann window
        win = 0.5 - 0.5 * np.cos(2.0 * np.pi * np.arange(l) / l)
        n = np.arange(int(np.floor(-l / 2.0)), int(np.floor(l / 2.0)))
        sig = win * np.exp(1j * 2.0 * np.pi * freq / fs * n) / l   # norm=False
        kern[k, start:start + l] = sig
    return (kern.real.astype(np.float32),
            kern.imag.astype(np.float32),
            lengths.astype(np.float32),
            fft_len)


def build_fused_cqt_bank(Q, fs, fmin, n_bins, bins_per_octave,
                         dtype=jnp.bfloat16):
    """Fused (KW, 2*NBH) bank: [real*sqrt(len) | imag*sqrt(len)], each half
    zero-padded to a multiple of 128 lanes, stored bf16 (review item: halves
    the dominant VMEM resident; sign of imag dropped -- lost in |.|^2)."""
    kr, ki, lengths, kw = create_cqt_kernels(Q, fs, fmin, n_bins, bins_per_octave)
    nbh = _round_up(n_bins, 128)
    s = np.sqrt(lengths)[:, None].astype(np.float32)          # librosa normalization
    w = np.zeros((kw, 2 * nbh), dtype=np.float32)
    w[:, :n_bins] = (kr * s).T
    w[:, nbh:nbh + n_bins] = (ki * s).T
    # TODO(synk): if n_bins <= 64 the real/imag halves could be packed into one
    # 128-lane group to halve bank size and matmul N (not valid for n_bins=72).
    return jnp.asarray(w, dtype=dtype), kw, nbh


# --------------------------------------------------------------------------
# Pallas kernel: hop-chunked strided-conv accumulation + magnitude + log1p.
# --------------------------------------------------------------------------
def _cqt_pallas_kernel(sig_ref, w_ref, o_ref, acc_ref, *,
                       hop, k_step, n_mm, group, frame_tile):
    # sig_ref: (n_rows_pad, hop)   full signal, row r = samples [r*hop,(r+1)*hop)
    # w_ref:   (KW, 2*NBH)         fused real|imag bank (sqrt_len folded in)
    # o_ref:   (frame_tile, NBH)   lane-dense log1p(|CQT|) tile
    # acc_ref: (frame_tile, 2*NBH) f32 accumulator scratch
    rows_per_mm = k_step // hop                                  # 1 or 2
    row0 = pl.multiple_of(pl.program_id(0) * frame_tile, frame_tile)

    def load_lhs(m):
        if rows_per_mm == 1:
            return sig_ref[pl.ds(row0 + m, frame_tile), :]       # (FT, hop)
        # K=2*hop pairing: lane-adjacent concat of two 128-lane slabs.
        a = sig_ref[pl.ds(row0 + 2 * m, frame_tile), :]
        b = sig_ref[pl.ds(row0 + 2 * m + 1, frame_tile), :]
        return jnp.concatenate([a, b], axis=-1)                  # (FT, 2*hop)

    def mm(m):
        k0 = pl.multiple_of(m * k_step, k_step)
        # bf16 x bf16 single MXU pass, f32 accumulation.
        return jnp.dot(load_lhs(m), w_ref[pl.ds(k0, k_step), :],
                       preferred_element_type=jnp.float32)

    acc_ref[...] = jnp.zeros_like(acc_ref)

    n_groups = n_mm // group

    def group_body(g, carry):
        base = pl.multiple_of(g * group, group)
        partial = mm(base)                       # register/MRB accumulation
        for j in range(1, group):                # static unroll inside the group
            partial = partial + mm(base + j)
        acc_ref[...] += partial                  # one VMEM round-trip per group
        return carry

    lax.fori_loop(0, n_groups, group_body, 0, unroll=False)

    acc = acc_ref[...]
    nbh = acc.shape[-1] // 2
    real = acc[:, :nbh]                                          # vreg-aligned split
    imag = acc[:, nbh:]
    o_ref[...] = jnp.log1p(jnp.sqrt(real * real + imag * imag))


def streamable_cqt(x, audio_buffer, w_fused, *, hop, kw, n_bins, frame_tile=128):
    """x: (1,1,T), audio_buffer: (1,1,kw-hop) -> (spec (1,NB,NF), new_buffer)."""
    xc = jnp.concatenate([audio_buffer, x], axis=-1)             # (1, 1, L)
    L = xc.shape[-1]
    assert kw % hop == 0 and L % hop == 0, "hop must divide kw and buffered length"
    n_rows = L // hop
    n_chunks = kw // hop
    n_frames = n_rows - n_chunks + 1
    assert n_frames >= 1
    nbh = w_fused.shape[1] // 2

    # Frame tiling: multiples of 8 sublanes; keep the "parallel" grid >= 2 steps
    # whenever possible (v7x has 2 TensorCores), padding n_frames up to a tile
    # multiple instead of collapsing to a single-step grid.
    frame_tile = max(8, (int(frame_tile) // 8) * 8)
    if n_frames <= frame_tile:
        frame_tile = max(8, _round_up(_round_up(n_frames, 2) // 2, 8))
    n_tiles = _round_up(n_frames, frame_tile) // frame_tile
    n_frames_pad = n_tiles * frame_tile

    # Chunk pairing: K = 2*hop on 256-deep MXUs (v6e/v7x), K = hop otherwise.
    rows_per_mm = 2 if (_mxu_k_depth() >= 2 * hop and n_chunks % 2 == 0) else 1
    k_step = rows_per_mm * hop
    n_mm = n_chunks // rows_per_mm
    group = math.gcd(n_mm, 8)                    # chunks per acc_ref update

    # Pad the (rows, hop) signal so padded frame tiles never read out of bounds
    # (no runtime OOB checks on VMEM refs) and rows are sublane-aligned.
    n_rows_pad = _round_up(n_frames_pad + n_chunks - 1, 8)
    sig2d = xc.reshape(n_rows, hop)
    if n_rows_pad > n_rows:
        sig2d = jnp.concatenate(
            [sig2d, jnp.zeros((n_rows_pad - n_rows, hop), sig2d.dtype)], axis=0)

    # Explicit VMEM limit: worst case (f32, everything double-buffered) + headroom.
    bank_bytes = kw * 2 * nbh * 4
    sig_bytes = n_rows_pad * hop * 4
    acc_bytes = frame_tile * 2 * nbh * 4
    out_bytes = frame_tile * nbh * 4
    vmem_limit = min(
        max(int(1.25 * (2 * (bank_bytes + sig_bytes) + acc_bytes + 2 * out_bytes))
            + (2 << 20), 32 << 20),
        64 << 20)

    kernel = functools.partial(_cqt_pallas_kernel, hop=hop, k_step=k_step,
                               n_mm=n_mm, group=group, frame_tile=frame_tile)

    def run(single_buffer, compute_dtype):
        sig = sig2d.astype(compute_dtype)
        w = w_fused.astype(compute_dtype)

        def const_spec(shape):
            # Constant block index -> DMA'd once, VMEM-resident for the whole
            # grid; single-buffer it so the pipeline doesn't hold a 2nd copy.
            if single_buffer and hasattr(pl, "Buffered"):
                try:
                    return pl.BlockSpec(shape, lambda i: (0, 0),
                                        pipeline_mode=pl.Buffered(1))
                except TypeError:
                    pass
            return pl.BlockSpec(shape, lambda i: (0, 0))

        return pl.pallas_call(
            kernel,
            out_shape=jax.ShapeDtypeStruct((n_frames_pad, nbh), jnp.float32),
            grid_spec=pltpu.PrefetchScalarGridSpec(
                num_scalar_prefetch=0,
                grid=(n_tiles,),
                in_specs=[
                    const_spec((n_rows_pad, hop)),       # whole signal
                    const_spec((kw, 2 * nbh)),           # fused kernel bank
                ],
                out_specs=pl.BlockSpec((frame_tile, nbh), lambda i: (i, 0)),
                scratch_shapes=[pltpu.VMEM((frame_tile, 2 * nbh), jnp.float32)],
            ),
            compiler_params=pltpu.CompilerParams(
                dimension_semantics=("parallel",),
                vmem_limit_bytes=vmem_limit),
        )(sig, w)

    # Preferred config first; silently fall back if Buffered(1) or bf16 packed
    # dynamic slicing is rejected by this Mosaic version.
    attempts = [(True, jnp.bfloat16), (False, jnp.bfloat16),
                (True, jnp.float32), (False, jnp.float32)]
    out, last_err = None, None
    for sb, cdt in attempts:
        try:
            out = run(sb, cdt)
            break
        except Exception as e:      # noqa: BLE001 - fallback ladder
            last_err = e
    if out is None:
        raise last_err

    spec = out[:n_frames, :n_bins].T[None, :, :]                 # (1, NB, NF)
    new_buffer = xc[..., -(kw - hop):]                           # streaming state
    return spec, new_buffer
    # TODO(synk): non-streaming path (stream=False: center=True padding and
    # spec[..., :-1]) not implemented; this reproduces the default stream=True path.


if __name__ == "__main__":
    # Small shapes consistent with the module (module defaults sr=44100,
    # fmin_index=2 give kernel width 32768//2 = 16384; here sr is scaled down so
    # the CQT kernel width -- and hence audio_buffer = KW - hop -- stays small).
    SR = 2048
    HOP = 128
    N_BINS = 24
    FMIN_INDEX = 2
    BPO = 12
    FMIN = FMIN_INDEX * 32.7
    Q = 1.0 / (2.0 ** (1.0 / BPO) - 1.0)

    w_fused, KW, NBH = build_fused_cqt_bank(Q, SR, FMIN, N_BINS, BPO)

    key = jax.random.PRNGKey(0)
    T = 16 * HOP                                               # 16 hops per call
    x = jax.random.normal(key, (1, 1, T), dtype=jnp.float32)
    audio_buffer = jnp.zeros((1, 1, KW - HOP), dtype=jnp.float32)

    spec, new_buf = streamable_cqt(x, audio_buffer, w_fused,
                                   hop=HOP, kw=KW, n_bins=N_BINS, frame_tile=128)
    spec = jax.block_until_ready(spec)

    # Exact-f32 reference of the module's forward pass
    # (strided conv -> librosa sqrt(len) scaling -> magnitude -> log1p).
    kr, ki, lengths, kw_chk = create_cqt_kernels(Q, SR, FMIN, N_BINS, BPO)
    assert kw_chk == KW
    kr_t = jnp.asarray(kr.T)
    ki_t = jnp.asarray(ki.T)
    s = jnp.sqrt(jnp.asarray(lengths))
    xc = jnp.concatenate([audio_buffer, x], axis=-1).reshape(-1)
    nf = (xc.shape[0] - KW) // HOP + 1
    frames = jnp.stack([xc[f * HOP:f * HOP + KW] for f in range(nf)])
    real = jnp.dot(frames, kr_t, precision=jax.lax.Precision.HIGHEST)
    imag = -jnp.dot(frames, ki_t, precision=jax.lax.Precision.HIGHEST)
    ref = jnp.log1p(jnp.sqrt((real * s) ** 2 + (imag * s) ** 2)).T[None]

    assert spec.shape == (1, N_BINS, nf), spec.shape
    assert new_buf.shape == (1, 1, KW - HOP), new_buf.shape
    # Kernel operands are bf16 (single MXU pass, f32 accumulate) per the perf
    # review, so compare against the exact f32 reference at 2e-2.
    assert bool(jnp.allclose(spec, ref, rtol=2e-2, atol=2e-2)), "mismatch vs reference"
    print("KERNEL_OK")
</pallas_src>

<mosaic_0001>
module attributes {stable_mosaic.version = 11 : i64} {
  func.func @_cqt_pallas_kernel(%arg0: i32, %arg1: memref<24x128xbf16, #tpu.memory_space<vmem>>, %arg2: memref<1024x256xbf16, #tpu.memory_space<vmem>>, %arg3: memref<8x128xf32, #tpu.memory_space<vmem>>, %arg4: memref<8x256xf32, #tpu.memory_space<vmem>>) attributes {dimension_semantics = [#tpu.dimension_semantics<parallel>], iteration_bounds = array<i64: 2>, scalar_prefetch = 0 : i64, scratch_operands = 1 : i64, tpu.core_type = #tpu.core_type<tc>, window_params = [{pipeline_mode = #tpu.pipeline_mode<synchronous>, transform_indices = @transform_0, window_bounds = array<i64: 24, 128>}, {pipeline_mode = #tpu.pipeline_mode<synchronous>, transform_indices = @transform_1, window_bounds = array<i64: 1024, 256>}, {transform_indices = @transform_2, window_bounds = array<i64: 8, 128>}]} {
    %c8_i32 = arith.constant 8 : i32
    %0 = arith.muli %arg0, %c8_i32 : i32
    %1 = tpu.assume_multiple %0, 8 : i32
    %cst = arith.constant 0.000000e+00 : f32
    %2 = vector.broadcast %cst : f32 to vector<8x256xf32>
    %c0 = arith.constant 0 : index
    %c0_0 = arith.constant 0 : index
    %3 = vector.load %arg4[%c0, %c0_0] : memref<8x256xf32, #tpu.memory_space<vmem>>, vector<8x256xf32>
    tpu.vector_store %arg4[%c0, %c0_0], %2 {strides = array<i32>} : memref<8x256xf32, #tpu.memory_space<vmem>>, vector<8x256xf32>,
    %c0_i32 = arith.constant 0 : i32
    %c4_i32 = arith.constant 4 : i32
    %4 = arith.muli %c0_i32, %c4_i32 : i32
    %5 = tpu.assume_multiple %4, 4 : i32
    %c256_i32 = arith.constant 256 : i32
    %6 = arith.muli %5, %c256_i32 : i32
    %7 = tpu.assume_multiple %6, 256 : i32
    %c2_i32 = arith.constant 2 : i32
    %8 = arith.muli %c2_i32, %5 : i32
    %9 = arith.addi %1, %8 : i32
    %10 = arith.index_cast %9 : i32 to index
    %c0_1 = arith.constant 0 : index
    %11 = vector.load %arg1[%10, %c0_1] : memref<24x128xbf16, #tpu.memory_space<vmem>>, vector<8x128xbf16>
    %c2_i32_2 = arith.constant 2 : i32
    %12 = arith.muli %c2_i32_2, %5 : i32
    %13 = arith.addi %1, %12 : i32
    %c1_i32 = arith.constant 1 : i32
    %14 = arith.addi %13, %c1_i32 : i32
    %15 = arith.index_cast %14 : i32 to index
    %c0_3 = arith.constant 0 : index
    %16 = vector.load %arg1[%15, %c0_3] : memref<24x128xbf16, #tpu.memory_space<vmem>>, vector<8x128xbf16>
    %17 = tpu.concatenate %11, %16 in 1 : vector<8x128xbf16>, vector<8x128xbf16> -> vector<8x256xbf16>
    %18 = arith.index_cast %7 : i32 to index
    %c0_4 = arith.constant 0 : index
    %19 = vector.load %arg2[%18, %c0_4] : memref<1024x256xbf16, #tpu.memory_space<vmem>>, vector<256x256xbf16>
    %cst_5 = arith.constant dense<0.000000e+00> : vector<8x256xf32>
    %20 = tpu.matmul %17, %19, %cst_5 {dimension_numbers = #tpu.dot_dimension_numbers<[1], [0], [0], [1], [0, 0, 1, 1], [], []>} : vector<8x256xbf16>, vector<256x256xbf16>, vector<8x256xf32> -> vector<8x256xf32>
    %c1_i32_6 = arith.constant 1 : i32
    %21 = arith.addi %5, %c1_i32_6 : i32
    %c256_i32_7 = arith.constant 256 : i32
    %22 = arith.muli %21, %c256_i32_7 : i32
    %23 = tpu.assume_multiple %22, 256 : i32
    %c2_i32_8 = arith.constant 2 : i32
    %24 = arith.muli %c2_i32_8, %21 : i32
    %25 = arith.addi %1, %24 : i32
    %26 = arith.index_cast %25 : i32 to index
    %c0_9 = arith.constant 0 : index
    %27 = vector.load %arg1[%26, %c0_9] : memref<24x128xbf16, #tpu.memory_space<vmem>>, vector<8x128xbf16>
    %c2_i32_10 = arith.constant 2 : i32
    %28 = arith.muli %c2_i32_10, %21 : i32
    %29 = arith.addi %1, %28 : i32
    %c1_i32_11 = arith.constant 1 : i32
    %30 = arith.addi %29, %c1_i32_11 : i32
    %31 = arith.index_cast %30 : i32 to index
    %c0_12 = arith.constant 0 : index
    %32 = vector.load %arg1[%31, %c0_12] : memref<24x128xbf16, #tpu.memory_space<vmem>>, vector<8x128xbf16>
    %33 = tpu.concatenate %27, %32 in 1 : vector<8x128xbf16>, vector<8x128xbf16> -> vector<8x256xbf16>
    %34 = arith.index_cast %23 : i32 to index
    %c0_13 = arith.constant 0 : index
    %35 = vector.load %arg2[%34, %c0_13] : memref<1024x256xbf16, #tpu.memory_space<vmem>>, vector<256x256xbf16>
    %cst_14 = arith.constant dense<0.000000e+00> : vector<8x256xf32>
    %36 = tpu.matmul %33, %35, %cst_14 {dimension_numbers = #tpu.dot_dimension_numbers<[1], [0], [0], [1], [0, 0, 1, 1], [], []>} : vector<8x256xbf16>, vector<256x256xbf16>, vector<8x256xf32> -> vector<8x256xf32>
    %37 = arith.addf %20, %36 : vector<8x256xf32>
    %c2_i32_15 = arith.constant 2 : i32
    %38 = arith.addi %5, %c2_i32_15 : i32
    %c256_i32_16 = arith.constant 256 : i32
    %39 = arith.muli %38, %c256_i32_16 : i32
    %40 = tpu.assume_multiple %39, 256 : i32
    %c2_i32_17 = arith.constant 2 : i32
    %41 = arith.muli %c2_i32_17, %38 : i32
    %42 = arith.addi %1, %41 : i32
    %43 = arith.index_cast %42 : i32 to index
    %c0_18 = arith.constant 0 : index
    %44 = vector.load %arg1[%43, %c0_18] : memref<24x128xbf16, #tpu.memory_space<vmem>>, vector<8x128xbf16>
    %c2_i32_19 = arith.constant 2 : i32
    %45 = arith.muli %c2_i32_19, %38 : i32
    %46 = arith.addi %1, %45 : i32
    %c1_i32_20 = arith.constant 1 : i32
    %47 = arith.addi %46, %c1_i32_20 : i32
    %48 = arith.index_cast %47 : i32 to index
    %c0_21 = arith.constant 0 : index
    %49 = vector.load %arg1[%48, %c0_21] : memref<24x128xbf16, #tpu.memory_space<vmem>>, vector<8x128xbf16>
    %50 = tpu.concatenate %44, %49 in 1 : vector<8x128xbf16>, vector<8x128xbf16> -> vector<8x256xbf16>
    %51 = arith.index_cast %40 : i32 to index
    %c0_22 = arith.constant 0 : index
    %52 = vector.load %arg2[%51, %c0_22] : memref<1024x256xbf16, #tpu.memory_space<vmem>>, vector<256x256xbf16>
    %cst_23 = arith.constant dense<0.000000e+00> : vector<8x256xf32>
    %53 = tpu.matmul %50, %52, %cst_23 {dimension_numbers = #tpu.dot_dimension_numbers<[1], [0], [0], [1], [0, 0, 1, 1], [], []>} : vector<8x256xbf16>, vector<256x256xbf16>, vector<8x256xf32> -> vector<8x256xf32>
    %54 = arith.addf %37, %53 : vector<8x256xf32>
    %c3_i32 = arith.constant 3 : i32
    %55 = arith.addi %5, %c3_i32 : i32
    %c256_i32_24 = arith.constant 256 : i32
    %56 = arith.muli %55, %c256_i32_24 : i32
    %57 = tpu.assume_multiple %56, 256 : i32
    %c2_i32_25 = arith.constant 2 : i32
    %58 = arith.muli %c2_i32_25, %55 : i32
    %59 = arith.addi %1, %58 : i32
    %60 = arith.index_cast %59 : i32 to index
    %c0_26 = arith.constant 0 : index
    %61 = vector.load %arg1[%60, %c0_26] : memref<24x128xbf16, #tpu.memory_space<vmem>>, vector<8x128xbf16>
    %c2_i32_27 = arith.constant 2 : i32
    %62 = arith.muli %c2_i32_27, %55 : i32
    %63 = arith.addi %1, %62 : i32
    %c1_i32_28 = arith.constant 1 : i32
    %64 = arith.addi %63, %c1_i32_28 : i32
    %65 = arith.index_cast %64 : i32 to index
    %c0_29 = arith.constant 0 : index
    %66 = vector.load %arg1[%65, %c0_29] : memref<24x128xbf16, #tpu.memory_space<vmem>>, vector<8x128xbf16>
    %67 = tpu.concatenate %61, %66 in 1 : vector<8x128xbf16>, vector<8x128xbf16> -> vector<8x256xbf16>
    %68 = arith.index_cast %57 : i32 to index
    %c0_30 = arith.constant 0 : index
    %69 = vector.load %arg2[%68, %c0_30] : memref<1024x256xbf16, #tpu.memory_space<vmem>>, vector<256x256xbf16>
    %cst_31 = arith.constant dense<0.000000e+00> : vector<8x256xf32>
    %70 = tpu.matmul %67, %69, %cst_31 {dimension_numbers = #tpu.dot_dimension_numbers<[1], [0], [0], [1], [0, 0, 1, 1], [], []>} : vector<8x256xbf16>, vector<256x256xbf16>, vector<8x256xf32> -> vector<8x256xf32>
    %71 = arith.addf %54, %70 : vector<8x256xf32>
    %c0_32 = arith.constant 0 : index
    %c0_33 = arith.constant 0 : index
    %72 = vector.load %arg4[%c0_32, %c0_33] : memref<8x256xf32, #tpu.memory_space<vmem>>, vector<8x256xf32>
    %73 = arith.addf %72, %71 : vector<8x256xf32>
    %c0_34 = arith.constant 0 : index
    %c0_35 = arith.constant 0 : index
    %74 = vector.load %arg4[%c0_34, %c0_35] : memref<8x256xf32, #tpu.memory_space<vmem>>, vector<8x256xf32>
    tpu.vector_store %arg4[%c0_34, %c0_35], %73 {strides = array<i32>} : memref<8x256xf32, #tpu.memory_space<vmem>>, vector<8x256xf32>,
    %c1_i32_36 = arith.constant 1 : i32
    %c0_37 = arith.constant 0 : index
    %c0_38 = arith.constant 0 : index
    %75 = vector.load %arg4[%c0_37, %c0_38] : memref<8x256xf32, #tpu.memory_space<vmem>>, vector<8x256xf32>
    %76 = vector.extract_strided_slice %75 {offsets = [0, 0], sizes = [8, 128], strides = [1, 1]} : vector<8x256xf32> to vector<8x128xf32>
    %77 = vector.extract_strided_slice %75 {offsets = [0, 128], sizes = [8, 128], strides = [1, 1]} : vector<8x256xf32> to vector<8x128xf32>
    %78 = arith.mulf %76, %76 : vector<8x128xf32>
    %79 = arith.mulf %77, %77 : vector<8x128xf32>
    %80 = arith.addf %78, %79 : vector<8x128xf32>
    %81 = math.sqrt %80 : vector<8x128xf32>
    %82 = math.log1p %81 : vector<8x128xf32>
    %c0_39 = arith.constant 0 : index
    %c0_40 = arith.constant 0 : index
    %83 = vector.load %arg3[%c0_39, %c0_40] : memref<8x128xf32, #tpu.memory_space<vmem>>, vector<8x128xf32>
    tpu.vector_store %arg3[%c0_39, %c0_40], %82 {strides = array<i32>} : memref<8x128xf32, #tpu.memory_space<vmem>>, vector<8x128xf32>,
    return
  }
  func.func @transform_0(%arg0: i32) -> (i32, i32) {
    %c0_i32 = arith.constant 0 : i32
    %c0_i32_0 = arith.constant 0 : i32
    %c0_i32_1 = arith.constant 0 : i32
    return %c0_i32, %c0_i32_0 : i32, i32
  }
  func.func @transform_1(%arg0: i32) -> (i32, i32) {
    %c0_i32 = arith.constant 0 : i32
    %c0_i32_0 = arith.constant 0 : i32
    %c0_i32_1 = arith.constant 0 : i32
    return %c0_i32, %c0_i32_0 : i32, i32
  }
  func.func @transform_2(%arg0: i32) -> (i32, i32) {
    %c0_i32 = arith.constant 0 : i32
    %c0_i32_0 = arith.constant 0 : i32
    return %arg0, %c0_i32 : i32, i32
  }
}

module attributes {stable_mosaic.version = 11 : i64} {
  func.func @_cqt_pallas_kernel(%arg0: i32, %arg1: memref<24x128xbf16, #tpu.memory_space<vmem>>, %arg2: memref<1024x256xbf16, #tpu.memory_space<vmem>>, %arg3: memref<8x128xf32, #tpu.memory_space<vmem>>, %arg4: memref<8x256xf32, #tpu.memory_space<vmem>>) attributes {dimension_semantics = [#tpu.dimension_semantics<parallel>], iteration_bounds = array<i64: 2>, scalar_prefetch = 0 : i64, scratch_operands = 1 : i64, tpu.core_type = #tpu.core_type<tc>, window_params = [{pipeline_mode = #tpu.pipeline_mode<synchronous>, transform_indices = @transform_0, window_bounds = array<i64: 24, 128>}, {pipeline_mode = #tpu.pipeline_mode<synchronous>, transform_indices = @transform_1, window_bounds = array<i64: 1024, 256>}, {transform_indices = @transform_2, window_bounds = array<i64: 8, 128>}]} {
    %c8_i32 = arith.constant 8 : i32
    %0 = arith.muli %arg0, %c8_i32 : i32
    %1 = tpu.assume_multiple %0, 8 : i32
    %cst = arith.constant 0.000000e+00 : f32
    %2 = vector.broadcast %cst : f32 to vector<8x256xf32>
    %c0 = arith.constant 0 : index
    %c0_0 = arith.constant 0 : index
    %3 = vector.load %arg4[%c0, %c0_0] : memref<8x256xf32, #tpu.memory_space<vmem>>, vector<8x256xf32>
    tpu.vector_store %arg4[%c0, %c0_0], %2 {strides = array<i32>} : memref<8x256xf32, #tpu.memory_space<vmem>>, vector<8x256xf32>,
    %c0_i32 = arith.constant 0 : i32
    %c4_i32 = arith.constant 4 : i32
    %4 = arith.muli %c0_i32, %c4_i32 : i32
    %5 = tpu.assume_multiple %4, 4 : i32
    %c256_i32 = arith.constant 256 : i32
    %6 = arith.muli %5, %c256_i32 : i32
    %7 = tpu.assume_multiple %6, 256 : i32
    %c2_i32 = arith.constant 2 : i32
    %8 = arith.muli %c2_i32, %5 : i32
    %9 = arith.addi %1, %8 : i32
    %10 = arith.index_cast %9 : i32 to index
    %c0_1 = arith.constant 0 : index
    %11 = vector.load %arg1[%10, %c0_1] : memref<24x128xbf16, #tpu.memory_space<vmem>>, vector<8x128xbf16>
    %c2_i32_2 = arith.constant 2 : i32
    %12 = arith.muli %c2_i32_2, %5 : i32
    %13 = arith.addi %1, %12 : i32
    %c1_i32 = arith.constant 1 : i32
    %14 = arith.addi %13, %c1_i32 : i32
    %15 = arith.index_cast %14 : i32 to index
    %c0_3 = arith.constant 0 : index
    %16 = vector.load %arg1[%15, %c0_3] : memref<24x128xbf16, #tpu.memory_space<vmem>>, vector<8x128xbf16>
    %17 = tpu.concatenate %11, %16 in 1 : vector<8x128xbf16>, vector<8x128xbf16> -> vector<8x256xbf16>
    %18 = arith.index_cast %7 : i32 to index
    %c0_4 = arith.constant 0 : index
    %19 = vector.load %arg2[%18, %c0_4] : memref<1024x256xbf16, #tpu.memory_space<vmem>>, vector<256x256xbf16>
    %cst_5 = arith.constant dense<0.000000e+00> : vector<8x256xf32>
    %20 = tpu.matmul %17, %19, %cst_5 {dimension_numbers = #tpu.dot_dimension_numbers<[1], [0], [0], [1], [0, 0, 1, 1], [], []>} : vector<8x256xbf16>, vector<256x256xbf16>, vector<8x256xf32> -> vector<8x256xf32>
    %c1_i32_6 = arith.constant 1 : i32
    %21 = arith.addi %5, %c1_i32_6 : i32
    %c256_i32_7 = arith.constant 256 : i32
    %22 = arith.muli %21, %c256_i32_7 : i32
    %23 = tpu.assume_multiple %22, 256 : i32
    %c2_i32_8 = arith.constant 2 : i32
    %24 = arith.muli %c2_i32_8, %21 : i32
    %25 = arith.addi %1, %24 : i32
    %26 = arith.index_cast %25 : i32 to index
    %c0_9 = arith.constant 0 : index
    %27 = vector.load %arg1[%26, %c0_9] : memref<24x128xbf16, #tpu.memory_space<vmem>>, vector<8x128xbf16>
    %c2_i32_10 = arith.constant 2 : i32
    %28 = arith.muli %c2_i32_10, %21 : i32
    %29 = arith.addi %1, %28 : i32
    %c1_i32_11 = arith.constant 1 : i32
    %30 = arith.addi %29, %c1_i32_11 : i32
    %31 = arith.index_cast %30 : i32 to index
    %c0_12 = arith.constant 0 : index
    %32 = vector.load %arg1[%31, %c0_12] : memref<24x128xbf16, #tpu.memory_space<vmem>>, vector<8x128xbf16>
    %33 = tpu.concatenate %27, %32 in 1 : vector<8x128xbf16>, vector<8x128xbf16> -> vector<8x256xbf16>
    %34 = arith.index_cast %23 : i32 to index
    %c0_13 = arith.constant 0 : index
    %35 = vector.load %arg2[%34, %c0_13] : memref<1024x256xbf16, #tpu.memory_space<vmem>>, vector<256x256xbf16>
    %cst_14 = arith.constant dense<0.000000e+00> : vector<8x256xf32>
    %36 = tpu.matmul %33, %35, %cst_14 {dimension_numbers = #tpu.dot_dimension_numbers<[1], [0], [0], [1], [0, 0, 1, 1], [], []>} : vector<8x256xbf16>, vector<256x256xbf16>, vector<8x256xf32> -> vector<8x256xf32>
    %37 = arith.addf %20, %36 : vector<8x256xf32>
    %c2_i32_15 = arith.constant 2 : i32
    %38 = arith.addi %5, %c2_i32_15 : i32
    %c256_i32_16 = arith.constant 256 : i32
    %39 = arith.muli %38, %c256_i32_16 : i32
    %40 = tpu.assume_multiple %39, 256 : i32
    %c2_i32_17 = arith.constant 2 : i32
    %41 = arith.muli %c2_i32_17, %38 : i32
    %42 = arith.addi %1, %41 : i32
    %43 = arith.index_cast %42 : i32 to index
    %c0_18 = arith.constant 0 : index
    %44 = vector.load %arg1[%43, %c0_18] : memref<24x128xbf16, #tpu.memory_space<vmem>>, vector<8x128xbf16>
    %c2_i32_19 = arith.constant 2 : i32
    %45 = arith.muli %c2_i32_19, %38 : i32
    %46 = arith.addi %1, %45 : i32
    %c1_i32_20 = arith.constant 1 : i32
    %47 = arith.addi %46, %c1_i32_20 : i32
    %48 = arith.index_cast %47 : i32 to index
    %c0_21 = arith.constant 0 : index
    %49 = vector.load %arg1[%48, %c0_21] : memref<24x128xbf16, #tpu.memory_space<vmem>>, vector<8x128xbf16>
    %50 = tpu.concatenate %44, %49 in 1 : vector<8x128xbf16>, vector<8x128xbf16> -> vector<8x256xbf16>
    %51 = arith.index_cast %40 : i32 to index
    %c0_22 = arith.constant 0 : index
    %52 = vector.load %arg2[%51, %c0_22] : memref<1024x256xbf16, #tpu.memory_space<vmem>>, vector<256x256xbf16>
    %cst_23 = arith.constant dense<0.000000e+00> : vector<8x256xf32>
    %53 = tpu.matmul %50, %52, %cst_23 {dimension_numbers = #tpu.dot_dimension_numbers<[1], [0], [0], [1], [0, 0, 1, 1], [], []>} : vector<8x256xbf16>, vector<256x256xbf16>, vector<8x256xf32> -> vector<8x256xf32>
    %54 = arith.addf %37, %53 : vector<8x256xf32>
    %c3_i32 = arith.constant 3 : i32
    %55 = arith.addi %5, %c3_i32 : i32
    %c256_i32_24 = arith.constant 256 : i32
    %56 = arith.muli %55, %c256_i32_24 : i32
    %57 = tpu.assume_multiple %56, 256 : i32
    %c2_i32_25 = arith.constant 2 : i32
    %58 = arith.muli %c2_i32_25, %55 : i32
    %59 = arith.addi %1, %58 : i32
    %60 = arith.index_cast %59 : i32 to index
    %c0_26 = arith.constant 0 : index
    %61 = vector.load %arg1[%60, %c0_26] : memref<24x128xbf16, #tpu.memory_space<vmem>>, vector<8x128xbf16>
    %c2_i32_27 = arith.constant 2 : i32
    %62 = arith.muli %c2_i32_27, %55 : i32
    %63 = arith.addi %1, %62 : i32
    %c1_i32_28 = arith.constant 1 : i32
    %64 = arith.addi %63, %c1_i32_28 : i32
    %65 = arith.index_cast %64 : i32 to index
    %c0_29 = arith.constant 0 : index
    %66 = vector.load %arg1[%65, %c0_29] : memref<24x128xbf16, #tpu.memory_space<vmem>>, vector<8x128xbf16>
    %67 = tpu.concatenate %61, %66 in 1 : vector<8x128xbf16>, vector<8x128xbf16> -> vector<8x256xbf16>
    %68 = arith.index_cast %57 : i32 to index
    %c0_30 = arith.constant 0 : index
    %69 = vector.load %arg2[%68, %c0_30] : memref<1024x256xbf16, #tpu.memory_space<vmem>>, vector<256x256xbf16>
    %cst_31 = arith.constant dense<0.000000e+00> : vector<8x256xf32>
    %70 = tpu.matmul %67, %69, %cst_31 {dimension_numbers = #tpu.dot_dimension_numbers<[1], [0], [0], [1], [0, 0, 1, 1], [], []>} : vector<8x256xbf16>, vector<256x256xbf16>, vector<8x256xf32> -> vector<8x256xf32>
    %71 = arith.addf %54, %70 : vector<8x256xf32>
    %c0_32 = arith.constant 0 : index
    %c0_33 = arith.constant 0 : index
    %72 = vector.load %arg4[%c0_32, %c0_33] : memref<8x256xf32, #tpu.memory_space<vmem>>, vector<8x256xf32>
    %73 = arith.addf %72, %71 : vector<8x256xf32>
    %c0_34 = arith.constant 0 : index
    %c0_35 = arith.constant 0 : index
    %74 = vector.load %arg4[%c0_34, %c0_35] : memref<8x256xf32, #tpu.memory_space<vmem>>, vector<8x256xf32>
    tpu.vector_store %arg4[%c0_34, %c0_35], %73 {strides = array<i32>} : memref<8x256xf32, #tpu.memory_space<vmem>>, vector<8x256xf32>,
    %c1_i32_36 = arith.constant 1 : i32
    %c0_37 = arith.constant 0 : index
    %c0_38 = arith.constant 0 : index
    %75 = vector.load %arg4[%c0_37, %c0_38] : memref<8x256xf32, #tpu.memory_space<vmem>>, vector<8x256xf32>
    %76 = vector.extract_strided_slice %75 {offsets = [0, 0], sizes = [8, 128], strides = [1, 1]} : vector<8x256xf32> to vector<8x128xf32>
    %77 = vector.extract_strided_slice %75 {offsets = [0, 128], sizes = [8, 128], strides = [1, 1]} : vector<8x256xf32> to vector<8x128xf32>
    %78 = arith.mulf %76, %76 : vector<8x128xf32>
    %79 = arith.mulf %77, %77 : vector<8x128xf32>
    %80 = arith.addf %78, %79 : vector<8x128xf32>
    %81 = math.sqrt %80 : vector<8x128xf32>
    %82 = math.log1p %81 : vector<8x128xf32>
    %c0_39 = arith.constant 0 : index
    %c0_40 = arith.constant 0 : index
    %83 = vector.load %arg3[%c0_39, %c0_40] : memref<8x128xf32, #tpu.memory_space<vmem>>, vector<8x128xf32>
    tpu.vector_store %arg3[%c0_39, %c0_40], %82 {strides = array<i32>} : memref<8x128xf32, #tpu.memory_space<vmem>>, vector<8x128xf32>,
    return
  }
  func.func @transform_0(%arg0: i32) -> (i32, i32) {
    %c0_i32 = arith.constant 0 : i32
    %c0_i32_0 = arith.constant 0 : i32
    %c0_i32_1 = arith.constant 0 : i32
    return %c0_i32, %c0_i32_0 : i32, i32
  }
  func.func @transform_1(%arg0: i32) -> (i32, i32) {
    %c0_i32 = arith.constant 0 : i32
    %c0_i32_0 = arith.constant 0 : i32
    %c0_i32_1 = arith.constant 0 : i32
    return %c0_i32, %c0_i32_0 : i32, i32
  }
  func.func @transform_2(%arg0: i32) -> (i32, i32) {
    %c0_i32 = arith.constant 0 : i32
    %c0_i32_0 = arith.constant 0 : i32
    return %arg0, %c0_i32 : i32, i32
  }
}

module attributes {stable_mosaic.version = 11 : i64} {
  func.func @_cqt_pallas_kernel(%arg0: i32, %arg1: memref<24x128xf32, #tpu.memory_space<vmem>>, %arg2: memref<1024x256xf32, #tpu.memory_space<vmem>>, %arg3: memref<8x128xf32, #tpu.memory_space<vmem>>, %arg4: memref<8x256xf32, #tpu.memory_space<vmem>>) attributes {dimension_semantics = [#tpu.dimension_semantics<parallel>], iteration_bounds = array<i64: 2>, scalar_prefetch = 0 : i64, scratch_operands = 1 : i64, tpu.core_type = #tpu.core_type<tc>, window_params = [{pipeline_mode = #tpu.pipeline_mode<synchronous>, transform_indices = @transform_0, window_bounds = array<i64: 24, 128>}, {pipeline_mode = #tpu.pipeline_mode<synchronous>, transform_indices = @transform_1, window_bounds = array<i64: 1024, 256>}, {transform_indices = @transform_2, window_bounds = array<i64: 8, 128>}]} {
    %c8_i32 = arith.constant 8 : i32
    %0 = arith.muli %arg0, %c8_i32 : i32
    %1 = tpu.assume_multiple %0, 8 : i32
    %cst = arith.constant 0.000000e+00 : f32
    %2 = vector.broadcast %cst : f32 to vector<8x256xf32>
    %c0 = arith.constant 0 : index
    %c0_0 = arith.constant 0 : index
    %3 = vector.load %arg4[%c0, %c0_0] : memref<8x256xf32, #tpu.memory_space<vmem>>, vector<8x256xf32>
    tpu.vector_store %arg4[%c0, %c0_0], %2 {strides = array<i32>} : memref<8x256xf32, #tpu.memory_space<vmem>>, vector<8x256xf32>,
    %c0_i32 = arith.constant 0 : i32
    %c4_i32 = arith.constant 4 : i32
    %4 = arith.muli %c0_i32, %c4_i32 : i32
    %5 = tpu.assume_multiple %4, 4 : i32
    %c256_i32 = arith.constant 256 : i32
    %6 = arith.muli %5, %c256_i32 : i32
    %7 = tpu.assume_multiple %6, 256 : i32
    %c2_i32 = arith.constant 2 : i32
    %8 = arith.muli %c2_i32, %5 : i32
    %9 = arith.addi %1, %8 : i32
    %10 = arith.index_cast %9 : i32 to index
    %c0_1 = arith.constant 0 : index
    %11 = vector.load %arg1[%10, %c0_1] : memref<24x128xf32, #tpu.memory_space<vmem>>, vector<8x128xf32>
    %c2_i32_2 = arith.constant 2 : i32
    %12 = arith.muli %c2_i32_2, %5 : i32
    %13 = arith.addi %1, %12 : i32
    %c1_i32 = arith.constant 1 : i32
    %14 = arith.addi %13, %c1_i32 : i32
    %15 = arith.index_cast %14 : i32 to index
    %c0_3 = arith.constant 0 : index
    %16 = vector.load %arg1[%15, %c0_3] : memref<24x128xf32, #tpu.memory_space<vmem>>, vector<8x128xf32>
    %17 = tpu.concatenate %11, %16 in 1 : vector<8x128xf32>, vector<8x128xf32> -> vector<8x256xf32>
    %18 = arith.index_cast %7 : i32 to index
    %c0_4 = arith.constant 0 : index
    %19 = vector.load %arg2[%18, %c0_4] : memref<1024x256xf32, #tpu.memory_space<vmem>>, vector<256x256xf32>
    %cst_5 = arith.constant dense<0.000000e+00> : vector<8x256xf32>
    %20 = tpu.matmul %17, %19, %cst_5 {dimension_numbers = #tpu.dot_dimension_numbers<[1], [0], [0], [1], [0, 0, 1, 1], [], []>} : vector<8x256xf32>, vector<256x256xf32>, vector<8x256xf32> -> vector<8x256xf32>
    %c1_i32_6 = arith.constant 1 : i32
    %21 = arith.addi %5, %c1_i32_6 : i32
    %c256_i32_7 = arith.constant 256 : i32
    %22 = arith.muli %21, %c256_i32_7 : i32
    %23 = tpu.assume_multiple %22, 256 : i32
    %c2_i32_8 = arith.constant 2 : i32
    %24 = arith.muli %c2_i32_8, %21 : i32
    %25 = arith.addi %1, %24 : i32
    %26 = arith.index_cast %25 : i32 to index
    %c0_9 = arith.constant 0 : index
    %27 = vector.load %arg1[%26, %c0_9] : memref<24x128xf32, #tpu.memory_space<vmem>>, vector<8x128xf32>
    %c2_i32_10 = arith.constant 2 : i32
    %28 = arith.muli %c2_i32_10, %21 : i32
    %29 = arith.addi %1, %28 : i32
    %c1_i32_11 = arith.constant 1 : i32
    %30 = arith.addi %29, %c1_i32_11 : i32
    %31 = arith.index_cast %30 : i32 to index
    %c0_12 = arith.constant 0 : index
    %32 = vector.load %arg1[%31, %c0_12] : memref<24x128xf32, #tpu.memory_space<vmem>>, vector<8x128xf32>
    %33 = tpu.concatenate %27, %32 in 1 : vector<8x128xf32>, vector<8x128xf32> -> vector<8x256xf32>
    %34 = arith.index_cast %23 : i32 to index
    %c0_13 = arith.constant 0 : index
    %35 = vector.load %arg2[%34, %c0_13] : memref<1024x256xf32, #tpu.memory_space<vmem>>, vector<256x256xf32>
    %cst_14 = arith.constant dense<0.000000e+00> : vector<8x256xf32>
    %36 = tpu.matmul %33, %35, %cst_14 {dimension_numbers = #tpu.dot_dimension_numbers<[1], [0], [0], [1], [0, 0, 1, 1], [], []>} : vector<8x256xf32>, vector<256x256xf32>, vector<8x256xf32> -> vector<8x256xf32>
    %37 = arith.addf %20, %36 : vector<8x256xf32>
    %c2_i32_15 = arith.constant 2 : i32
    %38 = arith.addi %5, %c2_i32_15 : i32
    %c256_i32_16 = arith.constant 256 : i32
    %39 = arith.muli %38, %c256_i32_16 : i32
    %40 = tpu.assume_multiple %39, 256 : i32
    %c2_i32_17 = arith.constant 2 : i32
    %41 = arith.muli %c2_i32_17, %38 : i32
    %42 = arith.addi %1, %41 : i32
    %43 = arith.index_cast %42 : i32 to index
    %c0_18 = arith.constant 0 : index
    %44 = vector.load %arg1[%43, %c0_18] : memref<24x128xf32, #tpu.memory_space<vmem>>, vector<8x128xf32>
    %c2_i32_19 = arith.constant 2 : i32
    %45 = arith.muli %c2_i32_19, %38 : i32
    %46 = arith.addi %1, %45 : i32
    %c1_i32_20 = arith.constant 1 : i32
    %47 = arith.addi %46, %c1_i32_20 : i32
    %48 = arith.index_cast %47 : i32 to index
    %c0_21 = arith.constant 0 : index
    %49 = vector.load %arg1[%48, %c0_21] : memref<24x128xf32, #tpu.memory_space<vmem>>, vector<8x128xf32>
    %50 = tpu.concatenate %44, %49 in 1 : vector<8x128xf32>, vector<8x128xf32> -> vector<8x256xf32>
    %51 = arith.index_cast %40 : i32 to index
    %c0_22 = arith.constant 0 : index
    %52 = vector.load %arg2[%51, %c0_22] : memref<1024x256xf32, #tpu.memory_space<vmem>>, vector<256x256xf32>
    %cst_23 = arith.constant dense<0.000000e+00> : vector<8x256xf32>
    %53 = tpu.matmul %50, %52, %cst_23 {dimension_numbers = #tpu.dot_dimension_numbers<[1], [0], [0], [1], [0, 0, 1, 1], [], []>} : vector<8x256xf32>, vector<256x256xf32>, vector<8x256xf32> -> vector<8x256xf32>
    %54 = arith.addf %37, %53 : vector<8x256xf32>
    %c3_i32 = arith.constant 3 : i32
    %55 = arith.addi %5, %c3_i32 : i32
    %c256_i32_24 = arith.constant 256 : i32
    %56 = arith.muli %55, %c256_i32_24 : i32
    %57 = tpu.assume_multiple %56, 256 : i32
    %c2_i32_25 = arith.constant 2 : i32
    %58 = arith.muli %c2_i32_25, %55 : i32
    %59 = arith.addi %1, %58 : i32
    %60 = arith.index_cast %59 : i32 to index
    %c0_26 = arith.constant 0 : index
    %61 = vector.load %arg1[%60, %c0_26] : memref<24x128xf32, #tpu.memory_space<vmem>>, vector<8x128xf32>
    %c2_i32_27 = arith.constant 2 : i32
    %62 = arith.muli %c2_i32_27, %55 : i32
    %63 = arith.addi %1, %62 : i32
    %c1_i32_28 = arith.constant 1 : i32
    %64 = arith.addi %63, %c1_i32_28 : i32
    %65 = arith.index_cast %64 : i32 to index
    %c0_29 = arith.constant 0 : index
    %66 = vector.load %arg1[%65, %c0_29] : memref<24x128xf32, #tpu.memory_space<vmem>>, vector<8x128xf32>
    %67 = tpu.concatenate %61, %66 in 1 : vector<8x128xf32>, vector<8x128xf32> -> vector<8x256xf32>
    %68 = arith.index_cast %57 : i32 to index
    %c0_30 = arith.constant 0 : index
    %69 = vector.load %arg2[%68, %c0_30] : memref<1024x256xf32, #tpu.memory_space<vmem>>, vector<256x256xf32>
    %cst_31 = arith.constant dense<0.000000e+00> : vector<8x256xf32>
    %70 = tpu.matmul %67, %69, %cst_31 {dimension_numbers = #tpu.dot_dimension_numbers<[1], [0], [0], [1], [0, 0, 1, 1], [], []>} : vector<8x256xf32>, vector<256x256xf32>, vector<8x256xf32> -> vector<8x256xf32>
    %71 = arith.addf %54, %70 : vector<8x256xf32>
    %c0_32 = arith.constant 0 : index
    %c0_33 = arith.constant 0 : index
    %72 = vector.load %arg4[%c0_32, %c0_33] : memref<8x256xf32, #tpu.memory_space<vmem>>, vector<8x256xf32>
    %73 = arith.addf %72, %71 : vector<8x256xf32>
    %c0_34 = arith.constant 0 : index
    %c0_35 = arith.constant 0 : index
    %74 = vector.load %arg4[%c0_34, %c0_35] : memref<8x256xf32, #tpu.memory_space<vmem>>, vector<8x256xf32>
    tpu.vector_store %arg4[%c0_34, %c0_35], %73 {strides = array<i32>} : memref<8x256xf32, #tpu.memory_space<vmem>>, vector<8x256xf32>,
    %c1_i32_36 = arith.constant 1 : i32
    %c0_37 = arith.constant 0 : index
    %c0_38 = arith.constant 0 : index
    %75 = vector.load %arg4[%c0_37, %c0_38] : memref<8x256xf32, #tpu.memory_space<vmem>>, vector<8x256xf32>
    %76 = vector.extract_strided_slice %75 {offsets = [0, 0], sizes = [8, 128], strides = [1, 1]} : vector<8x256xf32> to vector<8x128xf32>
    %77 = vector.extract_strided_slice %75 {offsets = [0, 128], sizes = [8, 128], strides = [1, 1]} : vector<8x256xf32> to vector<8x128xf32>
    %78 = arith.mulf %76, %76 : vector<8x128xf32>
    %79 = arith.mulf %77, %77 : vector<8x128xf32>
    %80 = arith.addf %78, %79 : vector<8x128xf32>
    %81 = math.sqrt %80 : vector<8x128xf32>
    %82 = math.log1p %81 : vector<8x128xf32>
    %c0_39 = arith.constant 0 : index
    %c0_40 = arith.constant 0 : index
    %83 = vector.load %arg3[%c0_39, %c0_40] : memref<8x128xf32, #tpu.memory_space<vmem>>, vector<8x128xf32>
    tpu.vector_store %arg3[%c0_39, %c0_40], %82 {strides = array<i32>} : memref<8x128xf32, #tpu.memory_space<vmem>>, vector<8x128xf32>,
    return
  }
  func.func @transform_0(%arg0: i32) -> (i32, i32) {
    %c0_i32 = arith.constant 0 : i32
    %c0_i32_0 = arith.constant 0 : i32
    %c0_i32_1 = arith.constant 0 : i32
    return %c0_i32, %c0_i32_0 : i32, i32
  }
  func.func @transform_1(%arg0: i32) -> (i32, i32) {
    %c0_i32 = arith.constant 0 : i32
    %c0_i32_0 = arith.constant 0 : i32
    %c0_i32_1 = arith.constant 0 : i32
    return %c0_i32, %c0_i32_0 : i32, i32
  }
  func.func @transform_2(%arg0: i32) -> (i32, i32) {
    %c0_i32 = arith.constant 0 : i32
    %c0_i32_0 = arith.constant 0 : i32
    return %arg0, %c0_i32 : i32, i32
  }
}

module attributes {stable_mosaic.version = 11 : i64} {
  func.func @_cqt_pallas_kernel(%arg0: i32, %arg1: memref<24x128xf32, #tpu.memory_space<vmem>>, %arg2: memref<1024x256xf32, #tpu.memory_space<vmem>>, %arg3: memref<8x128xf32, #tpu.memory_space<vmem>>, %arg4: memref<8x256xf32, #tpu.memory_space<vmem>>) attributes {dimension_semantics = [#tpu.dimension_semantics<parallel>], iteration_bounds = array<i64: 2>, scalar_prefetch = 0 : i64, scratch_operands = 1 : i64, tpu.core_type = #tpu.core_type<tc>, window_params = [{pipeline_mode = #tpu.pipeline_mode<synchronous>, transform_indices = @transform_0, window_bounds = array<i64: 24, 128>}, {pipeline_mode = #tpu.pipeline_mode<synchronous>, transform_indices = @transform_1, window_bounds = array<i64: 1024, 256>}, {transform_indices = @transform_2, window_bounds = array<i64: 8, 128>}]} {
    %c8_i32 = arith.constant 8 : i32
    %0 = arith.muli %arg0, %c8_i32 : i32
    %1 = tpu.assume_multiple %0, 8 : i32
    %cst = arith.constant 0.000000e+00 : f32
    %2 = vector.broadcast %cst : f32 to vector<8x256xf32>
    %c0 = arith.constant 0 : index
    %c0_0 = arith.constant 0 : index
    %3 = vector.load %arg4[%c0, %c0_0] : memref<8x256xf32, #tpu.memory_space<vmem>>, vector<8x256xf32>
    tpu.vector_store %arg4[%c0, %c0_0], %2 {strides = array<i32>} : memref<8x256xf32, #tpu.memory_space<vmem>>, vector<8x256xf32>,
    %c0_i32 = arith.constant 0 : i32
    %c4_i32 = arith.constant 4 : i32
    %4 = arith.muli %c0_i32, %c4_i32 : i32
    %5 = tpu.assume_multiple %4, 4 : i32
    %c256_i32 = arith.constant 256 : i32
    %6 = arith.muli %5, %c256_i32 : i32
    %7 = tpu.assume_multiple %6, 256 : i32
    %c2_i32 = arith.constant 2 : i32
    %8 = arith.muli %c2_i32, %5 : i32
    %9 = arith.addi %1, %8 : i32
    %10 = arith.index_cast %9 : i32 to index
    %c0_1 = arith.constant 0 : index
    %11 = vector.load %arg1[%10, %c0_1] : memref<24x128xf32, #tpu.memory_space<vmem>>, vector<8x128xf32>
    %c2_i32_2 = arith.constant 2 : i32
    %12 = arith.muli %c2_i32_2, %5 : i32
    %13 = arith.addi %1, %12 : i32
    %c1_i32 = arith.constant 1 : i32
    %14 = arith.addi %13, %c1_i32 : i32
    %15 = arith.index_cast %14 : i32 to index
    %c0_3 = arith.constant 0 : index
    %16 = vector.load %arg1[%15, %c0_3] : memref<24x128xf32, #tpu.memory_space<vmem>>, vector<8x128xf32>
    %17 = tpu.concatenate %11, %16 in 1 : vector<8x128xf32>, vector<8x128xf32> -> vector<8x256xf32>
    %18 = arith.index_cast %7 : i32 to index
    %c0_4 = arith.constant 0 : index
    %19 = vector.load %arg2[%18, %c0_4] : memref<1024x256xf32, #tpu.memory_space<vmem>>, vector<256x256xf32>
    %cst_5 = arith.constant dense<0.000000e+00> : vector<8x256xf32>
    %20 = tpu.matmul %17, %19, %cst_5 {dimension_numbers = #tpu.dot_dimension_numbers<[1], [0], [0], [1], [0, 0, 1, 1], [], []>} : vector<8x256xf32>, vector<256x256xf32>, vector<8x256xf32> -> vector<8x256xf32>
    %c1_i32_6 = arith.constant 1 : i32
    %21 = arith.addi %5, %c1_i32_6 : i32
    %c256_i32_7 = arith.constant 256 : i32
    %22 = arith.muli %21, %c256_i32_7 : i32
    %23 = tpu.assume_multiple %22, 256 : i32
    %c2_i32_8 = arith.constant 2 : i32
    %24 = arith.muli %c2_i32_8, %21 : i32
    %25 = arith.addi %1, %24 : i32
    %26 = arith.index_cast %25 : i32 to index
    %c0_9 = arith.constant 0 : index
    %27 = vector.load %arg1[%26, %c0_9] : memref<24x128xf32, #tpu.memory_space<vmem>>, vector<8x128xf32>
    %c2_i32_10 = arith.constant 2 : i32
    %28 = arith.muli %c2_i32_10, %21 : i32
    %29 = arith.addi %1, %28 : i32
    %c1_i32_11 = arith.constant 1 : i32
    %30 = arith.addi %29, %c1_i32_11 : i32
    %31 = arith.index_cast %30 : i32 to index
    %c0_12 = arith.constant 0 : index
    %32 = vector.load %arg1[%31, %c0_12] : memref<24x128xf32, #tpu.memory_space<vmem>>, vector<8x128xf32>
    %33 = tpu.concatenate %27, %32 in 1 : vector<8x128xf32>, vector<8x128xf32> -> vector<8x256xf32>
    %34 = arith.index_cast %23 : i32 to index
    %c0_13 = arith.constant 0 : index
    %35 = vector.load %arg2[%34, %c0_13] : memref<1024x256xf32, #tpu.memory_space<vmem>>, vector<256x256xf32>
    %cst_14 = arith.constant dense<0.000000e+00> : vector<8x256xf32>
    %36 = tpu.matmul %33, %35, %cst_14 {dimension_numbers = #tpu.dot_dimension_numbers<[1], [0], [0], [1], [0, 0, 1, 1], [], []>} : vector<8x256xf32>, vector<256x256xf32>, vector<8x256xf32> -> vector<8x256xf32>
    %37 = arith.addf %20, %36 : vector<8x256xf32>
    %c2_i32_15 = arith.constant 2 : i32
    %38 = arith.addi %5, %c2_i32_15 : i32
    %c256_i32_16 = arith.constant 256 : i32
    %39 = arith.muli %38, %c256_i32_16 : i32
    %40 = tpu.assume_multiple %39, 256 : i32
    %c2_i32_17 = arith.constant 2 : i32
    %41 = arith.muli %c2_i32_17, %38 : i32
    %42 = arith.addi %1, %41 : i32
    %43 = arith.index_cast %42 : i32 to index
    %c0_18 = arith.constant 0 : index
    %44 = vector.load %arg1[%43, %c0_18] : memref<24x128xf32, #tpu.memory_space<vmem>>, vector<8x128xf32>
    %c2_i32_19 = arith.constant 2 : i32
    %45 = arith.muli %c2_i32_19, %38 : i32
    %46 = arith.addi %1, %45 : i32
    %c1_i32_20 = arith.constant 1 : i32
    %47 = arith.addi %46, %c1_i32_20 : i32
    %48 = arith.index_cast %47 : i32 to index
    %c0_21 = arith.constant 0 : index
    %49 = vector.load %arg1[%48, %c0_21] : memref<24x128xf32, #tpu.memory_space<vmem>>, vector<8x128xf32>
    %50 = tpu.concatenate %44, %49 in 1 : vector<8x128xf32>, vector<8x128xf32> -> vector<8x256xf32>
    %51 = arith.index_cast %40 : i32 to index
    %c0_22 = arith.constant 0 : index
    %52 = vector.load %arg2[%51, %c0_22] : memref<1024x256xf32, #tpu.memory_space<vmem>>, vector<256x256xf32>
    %cst_23 = arith.constant dense<0.000000e+00> : vector<8x256xf32>
    %53 = tpu.matmul %50, %52, %cst_23 {dimension_numbers = #tpu.dot_dimension_numbers<[1], [0], [0], [1], [0, 0, 1, 1], [], []>} : vector<8x256xf32>, vector<256x256xf32>, vector<8x256xf32> -> vector<8x256xf32>
    %54 = arith.addf %37, %53 : vector<8x256xf32>
    %c3_i32 = arith.constant 3 : i32
    %55 = arith.addi %5, %c3_i32 : i32
    %c256_i32_24 = arith.constant 256 : i32
    %56 = arith.muli %55, %c256_i32_24 : i32
    %57 = tpu.assume_multiple %56, 256 : i32
    %c2_i32_25 = arith.constant 2 : i32
    %58 = arith.muli %c2_i32_25, %55 : i32
    %59 = arith.addi %1, %58 : i32
    %60 = arith.index_cast %59 : i32 to index
    %c0_26 = arith.constant 0 : index
    %61 = vector.load %arg1[%60, %c0_26] : memref<24x128xf32, #tpu.memory_space<vmem>>, vector<8x128xf32>
    %c2_i32_27 = arith.constant 2 : i32
    %62 = arith.muli %c2_i32_27, %55 : i32
    %63 = arith.addi %1, %62 : i32
    %c1_i32_28 = arith.constant 1 : i32
    %64 = arith.addi %63, %c1_i32_28 : i32
    %65 = arith.index_cast %64 : i32 to index
    %c0_29 = arith.constant 0 : index
    %66 = vector.load %arg1[%65, %c0_29] : memref<24x128xf32, #tpu.memory_space<vmem>>, vector<8x128xf32>
    %67 = tpu.concatenate %61, %66 in 1 : vector<8x128xf32>, vector<8x128xf32> -> vector<8x256xf32>
    %68 = arith.index_cast %57 : i32 to index
    %c0_30 = arith.constant 0 : index
    %69 = vector.load %arg2[%68, %c0_30] : memref<1024x256xf32, #tpu.memory_space<vmem>>, vector<256x256xf32>
    %cst_31 = arith.constant dense<0.000000e+00> : vector<8x256xf32>
    %70 = tpu.matmul %67, %69, %cst_31 {dimension_numbers = #tpu.dot_dimension_numbers<[1], [0], [0], [1], [0, 0, 1, 1], [], []>} : vector<8x256xf32>, vector<256x256xf32>, vector<8x256xf32> -> vector<8x256xf32>
    %71 = arith.addf %54, %70 : vector<8x256xf32>
    %c0_32 = arith.constant 0 : index
    %c0_33 = arith.constant 0 : index
    %72 = vector.load %arg4[%c0_32, %c0_33] : memref<8x256xf32, #tpu.memory_space<vmem>>, vector<8x256xf32>
    %73 = arith.addf %72, %71 : vector<8x256xf32>
    %c0_34 = arith.constant 0 : index
    %c0_35 = arith.constant 0 : index
    %74 = vector.load %arg4[%c0_34, %c0_35] : memref<8x256xf32, #tpu.memory_space<vmem>>, vector<8x256xf32>
    tpu.vector_store %arg4[%c0_34, %c0_35], %73 {strides = array<i32>} : memref<8x256xf32, #tpu.memory_space<vmem>>, vector<8x256xf32>,
    %c1_i32_36 = arith.constant 1 : i32
    %c0_37 = arith.constant 0 : index
    %c0_38 = arith.constant 0 : index
    %75 = vector.load %arg4[%c0_37, %c0_38] : memref<8x256xf32, #tpu.memory_space<vmem>>, vector<8x256xf32>
    %76 = vector.extract_strided_slice %75 {offsets = [0, 0], sizes = [8, 128], strides = [1, 1]} : vector<8x256xf32> to vector<8x128xf32>
    %77 = vector.extract_strided_slice %75 {offsets = [0, 128], sizes = [8, 128], strides = [1, 1]} : vector<8x256xf32> to vector<8x128xf32>
    %78 = arith.mulf %76, %76 : vector<8x128xf32>
    %79 = arith.mulf %77, %77 : vector<8x128xf32>
    %80 = arith.addf %78, %79 : vector<8x128xf32>
    %81 = math.sqrt %80 : vector<8x128xf32>
    %82 = math.log1p %81 : vector<8x128xf32>
    %c0_39 = arith.constant 0 : index
    %c0_40 = arith.constant 0 : index
    %83 = vector.load %arg3[%c0_39, %c0_40] : memref<8x128xf32, #tpu.memory_space<vmem>>, vector<8x128xf32>
    tpu.vector_store %arg3[%c0_39, %c0_40], %82 {strides = array<i32>} : memref<8x128xf32, #tpu.memory_space<vmem>>, vector<8x128xf32>,
    return
  }
  func.func @transform_0(%arg0: i32) -> (i32, i32) {
    %c0_i32 = arith.constant 0 : i32
    %c0_i32_0 = arith.constant 0 : i32
    %c0_i32_1 = arith.constant 0 : i32
    return %c0_i32, %c0_i32_0 : i32, i32
  }
  func.func @transform_1(%arg0: i32) -> (i32, i32) {
    %c0_i32 = arith.constant 0 : i32
    %c0_i32_0 = arith.constant 0 : i32
    %c0_i32_1 = arith.constant 0 : i32
    return %c0_i32, %c0_i32_0 : i32, i32
  }
  func.func @transform_2(%arg0: i32) -> (i32, i32) {
    %c0_i32 = arith.constant 0 : i32
    %c0_i32_0 = arith.constant 0 : i32
    return %arg0, %c0_i32 : i32, i32
  }
}

</mosaic_0001>

<llo_original>
// kernel: tpu_custom_call.1
$region0: #{tpu_custom_call.1}
  #allocation0 [shape = 'u32[]', space=smem, size = 0x4, offset = 0x4, fixed_abs, tag = 'smem constant byte address 0x4 - core index']
  #allocation1 [shape = 'u32[72,128]{1,0:T(1,128)}', space=vmem, size = 0x9000, scoped, tag = 'internal scratch']
  #allocation2 [shape = 'f32[8,256]{1,0:T(8,128)}', space=vmem, size = 0x2000, scoped, tag = 'scratch operand']
  %s0 = inlined_call_operand.hbm [shape: f32[24,128], index: 0, kind: input, shape index: {}]
  %s1 = inlined_call_operand.hbm [shape: f32[1024,256], index: 1, kind: input, shape index: {}]
  %s2 = inlined_call_operand.hbm [shape: f32[16,128], index: 2, kind: output, shape index: {}]
  %s3 = sld [smem:[#allocation0]]
  $region49: #{tpu_custom_call.1} parent=0
    _
  %s5 = ssub.s32 1, %s3
  %s6 = scalar_select 0, %s5, %s3
  $region1: #{tpu_custom_call.1} parent=0
    #allocation3 [shape = 'u8[12288]{0}', space=vmem, size = 0x3000, scoped, tag = 'input window, operand 0, single buffered']
    #allocation4 [shape = 's32[2]{0}', space=sflag, size = 0x8, scoped, tag = 'scoped memory for tpu_custom_call.1']
    #allocation5 [shape = 's32[2]{0}', space=sflag, size = 0x8, scoped, tag = 'scoped memory for tpu_custom_call.1']
    #allocation6 [shape = 'u8[1048576]{0}', space=vmem, size = 0x100000, scoped, tag = 'input window, operand 1, single buffered']
    #allocation7 [shape = 's32[1]{0}', space=sflag, size = 0x4, scoped, tag = 'scoped memory for tpu_custom_call.1']
    #allocation8 [shape = 'u8[8192]{0}', space=vmem, size = 0x2000, scoped, tag = 'output window, operand 0']
    %7 = vsyncpa [#allocation4], 0
    %8 = vsyncpa [#allocation7], 0
    %9 = vsyncpa [#allocation5], 0
    %s10 = scalar_lea.sflag [#allocation5], 1
    %11 = vsyncpa %s10, 0
    loop: start=0, step=1, limit=4
    $region2: #{tpu_custom_call.1} parent=1 // loop_pre_header
      _
    $region3: #{tpu_custom_call.1} parent=1 // loop_header
      %s13 = sphi 0, %s17
      %p14 = scmp.ge.s32.totalorder %s13, 4
      %s21 = sphi 0, %s21
      %s23 = sphi 0, %s21
      %s24 = sphi 0, %s23
      %s38 = sphi 0, %s24
      %s42 = sphi 0, %s42
      %s44 = sphi 0, %s42
      %s45 = sphi 0, %s44
      %s59 = sphi 0, %s45
      %s65 = sphi 0, %s67
      %s68 = sphi 0, %s65
      %s69 = sphi 0, %s68
      %s85 = sphi 0, %s69
    $region4: #{tpu_custom_call.1} parent=1 // loop_header_branch
      %16 = sbr.rel (%p14) target = $region8
    $region5: #{tpu_custom_call.1} parent=1 // loop_body
      %s18 = ssub.s32 %s13, 1
      %s19 = ssub.s32 %s13, 2
      %s20 = sadd.s32 %s13, 1
      %s22 = sadd.s32 %s21, 1
      %p25 = scmp.eq.s32.totalorder %s13, 1
      %p26 = scmp.ne.s32.totalorder %s21, %s23
      %p27 = scmp.eq.s32.totalorder %s13, 0
      %p28 = por %p26, %p27
      %p29 = scmp.ne.s32.totalorder %s21, %s23
      %p30 = scmp.eq.s32.totalorder %s18, 1
      %p31 = por %p29, %p30
      %p32 = scmp.ne.s32.totalorder %s23, %s24
      %p33 = scmp.eq.s32.totalorder %s18, 0
      %p34 = por %p32, %p33
      %p35 = scmp.ne.s32.totalorder %s23, %s24
      %p36 = scmp.eq.s32.totalorder %s19, 1
      %p37 = por %p35, %p36
      %p39 = scmp.ne.s32.totalorder %s24, %s38
      %p40 = scmp.eq.s32.totalorder %s19, 0
      %p41 = por %p39, %p40
      %s43 = sadd.s32 %s42, 1
      %p46 = scmp.eq.s32.totalorder %s13, 1
      %p47 = scmp.ne.s32.totalorder %s42, %s44
      %p48 = scmp.eq.s32.totalorder %s13, 0
      %p49 = por %p47, %p48
      %p50 = scmp.ne.s32.totalorder %s42, %s44
      %p51 = scmp.eq.s32.totalorder %s18, 1
      %p52 = por %p50, %p51
      %p53 = scmp.ne.s32.totalorder %s44, %s45
      %p54 = scmp.eq.s32.totalorder %s18, 0
      %p55 = por %p53, %p54
      %p56 = scmp.ne.s32.totalorder %s44, %s45
      %p57 = scmp.eq.s32.totalorder %s19, 1
      %p58 = por %p56, %p57
      %p60 = scmp.ne.s32.totalorder %s45, %s59
      %p61 = scmp.eq.s32.totalorder %s19, 0
      %p62 = por %p60, %p61
      %s63 = ssub.s32 %s13, %s20
      %p64 = scmp.eq.s32.totalorder %s63, 0
      %s66 = sadd.s32 %s65, 1
      %s67 = scalar_select %p64, %s65, %s66
      %p70 = pneg %p64
      %p71 = scmp.eq.s32.totalorder %s13, 1
      %p72 = por %p70, %p71
      %p73 = scmp.ne.s32.totalorder %s65, %s68
      %p74 = scmp.eq.s32.totalorder %s13, 0
      %p75 = por %p73, %p74
      %p76 = scmp.ne.s32.totalorder %s65, %s68
      %p77 = scmp.eq.s32.totalorder %s18, 1
      %p78 = por %p76, %p77
      %p79 = scmp.ne.s32.totalorder %s68, %s69
      %p80 = scmp.eq.s32.totalorder %s18, 0
      %p81 = por %p79, %p80
      %p82 = scmp.ne.s32.totalorder %s68, %s69
      %p83 = scmp.eq.s32.totalorder %s19, 1
      %p84 = por %p82, %p83
      %p86 = scmp.ne.s32.totalorder %s69, %s85
      %p87 = scmp.eq.s32.totalorder %s19, 0
      %p88 = por %p86, %p87
      %p89 = scmp.le.s32.totalorder 1, %s13
      %p90 = scmp.lt.s32.totalorder %s13, 3
      %p91 = pnand %p89, %p90
      %p92 = pneg %p91
      // Predicated region
      $region9: #{tpu_custom_call.1} parent=5 // pred_check
        _
      $region10: #{tpu_custom_call.1} parent=5 // pred_check_branch
        %94 = sbr.rel (%p91) target = $region12
      $region11: #{tpu_custom_call.1} parent=5 // pred_region
        %s95 = ssub.s32 %s13, 1
        // Predicated region
        $region13: #{tpu_custom_call.1} parent=11 // pred_check
          %p96 = pneg %p34
        $region14: #{tpu_custom_call.1} parent=11 // pred_check_branch
          %98 = sbr.rel (%p96) target = $region16
        $region15: #{tpu_custom_call.1} parent=11 // pred_region
          %100 = vsyncadd [#allocation4], 0
          %s101 = sshll.u32 %s0, 4
          %s102 = int_to_ptr.hbm [resolvable:$true] %s101
          %s103 = sshll.u32 [#allocation3], 4
          %s104 = int_to_ptr.vmem [resolvable:$true] %s103
          %109 = dma.hbm_to_vmem [thread:$0]  %s102, 384, %s104, [#allocation4], 128, 128, 8
        $region16: #{tpu_custom_call.1} parent=11 // pred_fallthru
          _
        // Predicated region
        $region17: #{tpu_custom_call.1} parent=11 // pred_check
          %p110 = pneg %p55
        $region18: #{tpu_custom_call.1} parent=11 // pred_check_branch
          %112 = sbr.rel (%p110) target = $region20
        $region19: #{tpu_custom_call.1} parent=11 // pred_region
          %114 = vsyncadd [#allocation7], 0
          %s115 = sshll.u32 %s1, 4
          %s116 = int_to_ptr.hbm [resolvable:$true] %s115
          %s117 = sshll.u32 [#allocation6], 4
          %s118 = int_to_ptr.vmem [resolvable:$true] %s117
          %123 = dma.hbm_to_vmem [thread:$0]  %s116, 32768, %s118, [#allocation7], 256, 256, 16
        $region20: #{tpu_custom_call.1} parent=11 // pred_fallthru
          _
      $region12: #{tpu_custom_call.1} parent=5 // pred_fallthru
        _
      %p124 = scmp.lt.s32.totalorder %s13, 2
      // Predicated region
      $region21: #{tpu_custom_call.1} parent=5 // pred_check
        %p125 = pneg %p124
      $region22: #{tpu_custom_call.1} parent=5 // pred_check_branch
        %127 = sbr.rel (%p125) target = $region24
      $region23: #{tpu_custom_call.1} parent=5 // pred_region
        _
      $region24: #{tpu_custom_call.1} parent=5 // pred_fallthru
        _
      %p128 = scmp.le.s32.totalorder 1, %s13
      %p129 = scmp.lt.s32.totalorder %s13, 3
      %p130 = pnand %p128, %p129
      %p131 = pneg %p130
      // Predicated region
      $region25: #{tpu_custom_call.1} parent=5 // pred_check
        _
      $region26: #{tpu_custom_call.1} parent=5 // pred_check_branch
        %133 = sbr.rel (%p130) target = $region28
      $region27: #{tpu_custom_call.1} parent=5 // pred_region
        %s134 = ssub.s32 %s13, 1
        // Predicated region
        $region29: #{tpu_custom_call.1} parent=27 // pred_check
          %p135 = pneg %p34
        $region30: #{tpu_custom_call.1} parent=27 // pred_check_branch
          %137 = sbr.rel (%p135) target = $region32
        $region31: #{tpu_custom_call.1} parent=27 // pred_region
          %139 = dma.done [#allocation4], 384
        $region32: #{tpu_custom_call.1} parent=27 // pred_fallthru
          _
        // Predicated region
        $region33: #{tpu_custom_call.1} parent=27 // pred_check
          %p140 = pneg %p55
        $region34: #{tpu_custom_call.1} parent=27 // pred_check_branch
          %142 = sbr.rel (%p140) target = $region36
        $region35: #{tpu_custom_call.1} parent=27 // pred_region
          %144 = dma.done [#allocation7], 32768
        $region36: #{tpu_custom_call.1} parent=27 // pred_fallthru
          _
        %p145 = pneg %p34
        %p146 = pneg %p31
        %p147 = pneg %p55
        %p148 = pneg %p52
        %p149 = pneg %p81
        %p150 = pneg %p78
        %s151 = sand.u32 %s68, 1
        %s152 = scalar_lea.sflag [#allocation5], %s151
        %s153 = sand.u32 %s68, 1
        %s154 = smul.addr %s153, 8
        %s155 = scalar_lea.vmem [#allocation8], %s154
        %s156 = smul.u32 %s18, 8
        %157 = vst [vmem:[#allocation2] sm:$0xff] 0.0
        %158 = vst [vmem:[#allocation2 + $0x8] sm:$0xff] 0.0
        %s159 = smul.u32 0, 256
        %s160 = smul.u32 0, 2
        %s161 = sadd.s32 %s156, %s160
        %s162 = scalar_lea.vmem [#allocation3], %s161
        %v163 = vld [vmem:[%s162] sm:$0xff]
        %s164 = sadd.s32 %s161, 1
        %s165 = scalar_lea.vmem [#allocation3], %s164
        %v166 = vld [vmem:[%s165] sm:$0xff]
        %s167 = sshra.s32 %s159, 3
        %s168 = sand.u32 %s159, 7
        %s169 = smul.u32 %s167, 2
        %s170 = smul.addr %s169, 8
        %s171 = scalar_lea.vmem [#allocation6], %s170
        %v172 = vld [vmem:[%s171] sm:$0xff]
        %v173 = vld [vmem:[%s171 + $0x8] sm:$0xff]
        %v174 = vld [vmem:[%s171 + $0x10] sm:$0xff]
        %v175 = vld [vmem:[%s171 + $0x18] sm:$0xff]
        %v176 = vld [vmem:[%s171 + $0x20] sm:$0xff]
        %v177 = vld [vmem:[%s171 + $0x28] sm:$0xff]
        %v178 = vld [vmem:[%s171 + $0x30] sm:$0xff]
        %v179 = vld [vmem:[%s171 + $0x38] sm:$0xff]
        %v180 = vld [vmem:[%s171 + $0x40] sm:$0xff]
        %v181 = vld [vmem:[%s171 + $0x48] sm:$0xff]
        %v182 = vld [vmem:[%s171 + $0x50] sm:$0xff]
        %v183 = vld [vmem:[%s171 + $0x58] sm:$0xff]
        %v184 = vld [vmem:[%s171 + $0x60] sm:$0xff]
        %v185 = vld [vmem:[%s171 + $0x68] sm:$0xff]
        %v186 = vld [vmem:[%s171 + $0x70] sm:$0xff]
        %v187 = vld [vmem:[%s171 + $0x78] sm:$0xff]
        %v188 = vld [vmem:[%s171 + $0x80] sm:$0xff]
        %v189 = vld [vmem:[%s171 + $0x88] sm:$0xff]
        %v190 = vld [vmem:[%s171 + $0x90] sm:$0xff]
        %v191 = vld [vmem:[%s171 + $0x98] sm:$0xff]
        %v192 = vld [vmem:[%s171 + $0xa0] sm:$0xff]
        %v193 = vld [vmem:[%s171 + $0xa8] sm:$0xff]
        %v194 = vld [vmem:[%s171 + $0xb0] sm:$0xff]
        %v195 = vld [vmem:[%s171 + $0xb8] sm:$0xff]
        %v196 = vld [vmem:[%s171 + $0xc0] sm:$0xff]
        %v197 = vld [vmem:[%s171 + $0xc8] sm:$0xff]
        %v198 = vld [vmem:[%s171 + $0xd0] sm:$0xff]
        %v199 = vld [vmem:[%s171 + $0xd8] sm:$0xff]
        %v200 = vld [vmem:[%s171 + $0xe0] sm:$0xff]
        %v201 = vld [vmem:[%s171 + $0xe8] sm:$0xff]
        %v202 = vld [vmem:[%s171 + $0xf0] sm:$0xff]
        %v203 = vld [vmem:[%s171 + $0xf8] sm:$0xff]
        %v204 = vld [vmem:[%s171 + $0x100] sm:$0xff]
        %v205 = vld [vmem:[%s171 + $0x108] sm:$0xff]
        %v206 = vld [vmem:[%s171 + $0x110] sm:$0xff]
        %v207 = vld [vmem:[%s171 + $0x118] sm:$0xff]
        %v208 = vld [vmem:[%s171 + $0x120] sm:$0xff]
        %v209 = vld [vmem:[%s171 + $0x128] sm:$0xff]
        %v210 = vld [vmem:[%s171 + $0x130] sm:$0xff]
        %v211 = vld [vmem:[%s171 + $0x138] sm:$0xff]
        %v212 = vld [vmem:[%s171 + $0x140] sm:$0xff]
        %v213 = vld [vmem:[%s171 + $0x148] sm:$0xff]
        %v214 = vld [vmem:[%s171 + $0x150] sm:$0xff]
        %v215 = vld [vmem:[%s171 + $0x158] sm:$0xff]
        %v216 = vld [vmem:[%s171 + $0x160] sm:$0xff]
        %v217 = vld [vmem:[%s171 + $0x168] sm:$0xff]
        %v218 = vld [vmem:[%s171 + $0x170] sm:$0xff]
        %v219 = vld [vmem:[%s171 + $0x178] sm:$0xff]
        %v220 = vld [vmem:[%s171 + $0x180] sm:$0xff]
        %v221 = vld [vmem:[%s171 + $0x188] sm:$0xff]
        %v222 = vld [vmem:[%s171 + $0x190] sm:$0xff]
        %v223 = vld [vmem:[%s171 + $0x198] sm:$0xff]
        %v224 = vld [vmem:[%s171 + $0x1a0] sm:$0xff]
        %v225 = vld [vmem:[%s171 + $0x1a8] sm:$0xff]
        %v226 = vld [vmem:[%s171 + $0x1b0] sm:$0xff]
        %v227 = vld [vmem:[%s171 + $0x1b8] sm:$0xff]
        %v228 = vld [vmem:[%s171 + $0x1c0] sm:$0xff]
        %v229 = vld [vmem:[%s171 + $0x1c8] sm:$0xff]
        %v230 = vld [vmem:[%s171 + $0x1d0] sm:$0xff]
        %v231 = vld [vmem:[%s171 + $0x1d8] sm:$0xff]
        %v232 = vld [vmem:[%s171 + $0x1e0] sm:$0xff]
        %v233 = vld [vmem:[%s171 + $0x1e8] sm:$0xff]
        %v234 = vld [vmem:[%s171 + $0x1f0] sm:$0xff]
        %v235 = vld [vmem:[%s171 + $0x1f8] sm:$0xff]
        %s236 = sadd.s32 0, 1
        %s237 = smul.u32 %s236, 256
        %s238 = smul.u32 %s236, 2
        %s239 = sadd.s32 %s156, %s238
        %s240 = scalar_lea.vmem [#allocation3], %s239
        %v241 = vld [vmem:[%s240] sm:$0xff]
        %s242 = sadd.s32 %s239, 1
        %s243 = scalar_lea.vmem [#allocation3], %s242
        %v244 = vld [vmem:[%s243] sm:$0xff]
        %s245 = sshra.s32 %s237, 3
        %s246 = sand.u32 %s237, 7
        %s247 = smul.u32 %s245, 2
        %s248 = smul.addr %s247, 8
        %s249 = scalar_lea.vmem [#allocation6], %s248
        %v250 = vld [vmem:[%s249] sm:$0xff]
        %v251 = vld [vmem:[%s249 + $0x8] sm:$0xff]
        %v252 = vld [vmem:[%s249 + $0x10] sm:$0xff]
        %v253 = vld [vmem:[%s249 + $0x18] sm:$0xff]
        %v254 = vld [vmem:[%s249 + $0x20] sm:$0xff]
        %v255 = vld [vmem:[%s249 + $0x28] sm:$0xff]
        %v256 = vld [vmem:[%s249 + $0x30] sm:$0xff]
        %v257 = vld [vmem:[%s249 + $0x38] sm:$0xff]
        %v258 = vld [vmem:[%s249 + $0x40] sm:$0xff]
        %v259 = vld [vmem:[%s249 + $0x48] sm:$0xff]
        %v260 = vld [vmem:[%s249 + $0x50] sm:$0xff]
        %v261 = vld [vmem:[%s249 + $0x58] sm:$0xff]
        %v262 = vld [vmem:[%s249 + $0x60] sm:$0xff]
        %v263 = vld [vmem:[%s249 + $0x68] sm:$0xff]
        %v264 = vld [vmem:[%s249 + $0x70] sm:$0xff]
        %v265 = vld [vmem:[%s249 + $0x78] sm:$0xff]
        %v266 = vld [vmem:[%s249 + $0x80] sm:$0xff]
        %v267 = vld [vmem:[%s249 + $0x88] sm:$0xff]
        %v268 = vld [vmem:[%s249 + $0x90] sm:$0xff]
        %v269 = vld [vmem:[%s249 + $0x98] sm:$0xff]
        %v270 = vld [vmem:[%s249 + $0xa0] sm:$0xff]
        %v271 = vld [vmem:[%s249 + $0xa8] sm:$0xff]
        %v272 = vld [vmem:[%s249 + $0xb0] sm:$0xff]
        %v273 = vld [vmem:[%s249 + $0xb8] sm:$0xff]
        %v274 = vld [vmem:[%s249 + $0xc0] sm:$0xff]
        %v275 = vld [vmem:[%s249 + $0xc8] sm:$0xff]
        %v276 = vld [vmem:[%s249 + $0xd0] sm:$0xff]
        %v277 = vld [vmem:[%s249 + $0xd8] sm:$0xff]
        %v278 = vld [vmem:[%s249 + $0xe0] sm:$0xff]
        %v279 = vld [vmem:[%s249 + $0xe8] sm:$0xff]
        %v280 = vld [vmem:[%s249 + $0xf0] sm:$0xff]
        %v281 = vld [vmem:[%s249 + $0xf8] sm:$0xff]
        %v282 = vld [vmem:[%s249 + $0x100] sm:$0xff]
        %v283 = vld [vmem:[%s249 + $0x108] sm:$0xff]
        %v284 = vld [vmem:[%s249 + $0x110] sm:$0xff]
        %v285 = vld [vmem:[%s249 + $0x118] sm:$0xff]
        %v286 = vld [vmem:[%s249 + $0x120] sm:$0xff]
        %v287 = vld [vmem:[%s249 + $0x128] sm:$0xff]
        %v288 = vld [vmem:[%s249 + $0x130] sm:$0xff]
        %v289 = vld [vmem:[%s249 + $0x138] sm:$0xff]
        %v290 = vld [vmem:[%s249 + $0x140] sm:$0xff]
        %v291 = vld [vmem:[%s249 + $0x148] sm:$0xff]
        %v292 = vld [vmem:[%s249 + $0x150] sm:$0xff]
        %v293 = vld [vmem:[%s249 + $0x158] sm:$0xff]
        %v294 = vld [vmem:[%s249 + $0x160] sm:$0xff]
        %v295 = vld [vmem:[%s249 + $0x168] sm:$0xff]
        %v296 = vld [vmem:[%s249 + $0x170] sm:$0xff]
        %v297 = vld [vmem:[%s249 + $0x178] sm:$0xff]
        %v298 = vld [vmem:[%s249 + $0x180] sm:$0xff]
        %v299 = vld [vmem:[%s249 + $0x188] sm:$0xff]
        %v300 = vld [vmem:[%s249 + $0x190] sm:$0xff]
        %v301 = vld [vmem:[%s249 + $0x198] sm:$0xff]
        %v302 = vld [vmem:[%s249 + $0x1a0] sm:$0xff]
        %v303 = vld [vmem:[%s249 + $0x1a8] sm:$0xff]
        %v304 = vld [vmem:[%s249 + $0x1b0] sm:$0xff]
        %v305 = vld [vmem:[%s249 + $0x1b8] sm:$0xff]
        %v306 = vld [vmem:[%s249 + $0x1c0] sm:$0xff]
        %v307 = vld [vmem:[%s249 + $0x1c8] sm:$0xff]
        %v308 = vld [vmem:[%s249 + $0x1d0] sm:$0xff]
        %v309 = vld [vmem:[%s249 + $0x1d8] sm:$0xff]
        %v310 = vld [vmem:[%s249 + $0x1e0] sm:$0xff]
        %v311 = vld [vmem:[%s249 + $0x1e8] sm:$0xff]
        %v312 = vld [vmem:[%s249 + $0x1f0] sm:$0xff]
        %v313 = vld [vmem:[%s249 + $0x1f8] sm:$0xff]
        %314 = vmatpush.msra.mxu0 %v280
        %315 = vmatpush.msra.mxu0 %v278
        %316 = vmatpush.msra.mxu0 %v276
        %317 = vmatpush.msra.mxu0 %v274
        %318 = vmatpush.msra.mxu0 %v272
        %319 = vmatpush.msra.mxu0 %v270
        %320 = vmatpush.msra.mxu0 %v268
        %321 = vmatpush.msra.mxu0 %v266
        %322 = vmatpush.msra.mxu0 %v264
        %323 = vmatpush.msra.mxu0 %v262
        %324 = vmatpush.msra.mxu0 %v260
        %325 = vmatpush.msra.mxu0 %v258
        %326 = vmatpush.msra.mxu0 %v256
        %327 = vmatpush.msra.mxu0 %v254
        %328 = vmatpush.msra.mxu0 %v252
        %329 = vmatpush.msra.mxu0 %v250
        %330 = vmatmul.f32.gmra.mxu0 %v241
        %v331 = vpop.f32.mrf.mxu0
        %v332 = vadd.f32 0.0, %v331
        %333 = vdwg.mxu0
        %334 = vmatpush.msra.mxu0 %v312
        %335 = vmatpush.msra.mxu0 %v310
        %336 = vmatpush.msra.mxu0 %v308
        %337 = vmatpush.msra.mxu0 %v306
        %338 = vmatpush.msra.mxu0 %v304
        %339 = vmatpush.msra.mxu0 %v302
        %340 = vmatpush.msra.mxu0 %v300
        %341 = vmatpush.msra.mxu0 %v298
        %342 = vmatpush.msra.mxu0 %v296
        %343 = vmatpush.msra.mxu0 %v294
        %344 = vmatpush.msra.mxu0 %v292
        %345 = vmatpush.msra.mxu0 %v290
        %346 = vmatpush.msra.mxu0 %v288
        %347 = vmatpush.msra.mxu0 %v286
        %348 = vmatpush.msra.mxu0 %v284
        %349 = vmatpush.msra.mxu0 %v282
        %350 = vmatmul.f32.gmra.mxu0 %v244
        %v351 = vpop.f32.mrf.mxu0
        %v352 = vadd.f32 %v332, %v351
        %353 = vdwg.mxu0
        %354 = vmatpush.msra.mxu0 %v281
        %355 = vmatpush.msra.mxu0 %v279
        %356 = vmatpush.msra.mxu0 %v277
        %357 = vmatpush.msra.mxu0 %v275
        %358 = vmatpush.msra.mxu0 %v273
        %359 = vmatpush.msra.mxu0 %v271
        %360 = vmatpush.msra.mxu0 %v269
        %361 = vmatpush.msra.mxu0 %v267
        %362 = vmatpush.msra.mxu0 %v265
        %363 = vmatpush.msra.mxu0 %v263
        %364 = vmatpush.msra.mxu0 %v261
        %365 = vmatpush.msra.mxu0 %v259
        %366 = vmatpush.msra.mxu0 %v257
        %367 = vmatpush.msra.mxu0 %v255
        %368 = vmatpush.msra.mxu0 %v253
        %369 = vmatpush.msra.mxu0 %v251
        %370 = vmatmul.f32.gmra.mxu0 %v241
        %v371 = vpop.f32.mrf.mxu0
        %v372 = vadd.f32 0.0, %v371
        %373 = vdwg.mxu0
        %374 = vmatpush.msra.mxu0 %v313
        %375 = vmatpush.msra.mxu0 %v311
        %376 = vmatpush.msra.mxu0 %v309
        %377 = vmatpush.msra.mxu0 %v307
        %378 = vmatpush.msra.mxu0 %v305
        %379 = vmatpush.msra.mxu0 %v303
        %380 = vmatpush.msra.mxu0 %v301
        %381 = vmatpush.msra.mxu0 %v299
        %382 = vmatpush.msra.mxu0 %v297
        %383 = vmatpush.msra.mxu0 %v295
        %384 = vmatpush.msra.mxu0 %v293
        %385 = vmatpush.msra.mxu0 %v291
        %386 = vmatpush.msra.mxu0 %v289
        %387 = vmatpush.msra.mxu0 %v287
        %388 = vmatpush.msra.mxu0 %v285
        %389 = vmatpush.msra.mxu0 %v283
        %390 = vmatmul.f32.gmra.mxu0 %v244
        %v391 = vpop.f32.mrf.mxu0
        %v392 = vadd.f32 %v372, %v391
        %393 = vdwg.mxu0
        %394 = vmatpush.msra.mxu0 %v202
        %395 = vmatpush.msra.mxu0 %v200
        %396 = vmatpush.msra.mxu0 %v198
        %397 = vmatpush.msra.mxu0 %v196
        %398 = vmatpush.msra.mxu0 %v194
        %399 = vmatpush.msra.mxu0 %v192
        %400 = vmatpush.msra.mxu0 %v190
        %401 = vmatpush.msra.mxu0 %v188
        %402 = vmatpush.msra.mxu0 %v186
        %403 = vmatpush.msra.mxu0 %v184
        %404 = vmatpush.msra.mxu0 %v182
        %405 = vmatpush.msra.mxu0 %v180
        %406 = vmatpush.msra.mxu0 %v178
        %407 = vmatpush.msra.mxu0 %v176
        %408 = vmatpush.msra.mxu0 %v174
        %409 = vmatpush.msra.mxu0 %v172
        %410 = vmatmul.f32.gmra.mxu0 %v163
        %v411 = vpop.f32.mrf.mxu0
        %v412 = vadd.f32 %v352, %v411
        %413 = vdwg.mxu0
        %414 = vmatpush.msra.mxu0 %v234
        %415 = vmatpush.msra.mxu0 %v232
        %416 = vmatpush.msra.mxu0 %v230
        %417 = vmatpush.msra.mxu0 %v228
        %418 = vmatpush.msra.mxu0 %v226
        %419 = vmatpush.msra.mxu0 %v224
        %420 = vmatpush.msra.mxu0 %v222
        %421 = vmatpush.msra.mxu0 %v220
        %422 = vmatpush.msra.mxu0 %v218
        %423 = vmatpush.msra.mxu0 %v216
        %424 = vmatpush.msra.mxu0 %v214
        %425 = vmatpush.msra.mxu0 %v212
        %426 = vmatpush.msra.mxu0 %v210
        %427 = vmatpush.msra.mxu0 %v208
        %428 = vmatpush.msra.mxu0 %v206
        %429 = vmatpush.msra.mxu0 %v204
        %430 = vmatmul.f32.gmra.mxu0 %v166
        %v431 = vpop.f32.mrf.mxu0
        %v432 = vadd.f32 %v412, %v431
        %433 = vdwg.mxu0
        %434 = vmatpush.msra.mxu0 %v203
        %435 = vmatpush.msra.mxu0 %v201
        %436 = vmatpush.msra.mxu0 %v199
        %437 = vmatpush.msra.mxu0 %v197
        %438 = vmatpush.msra.mxu0 %v195
        %439 = vmatpush.msra.mxu0 %v193
        %440 = vmatpush.msra.mxu0 %v191
        %441 = vmatpush.msra.mxu0 %v189
        %442 = vmatpush.msra.mxu0 %v187
        %443 = vmatpush.msra.mxu0 %v185
        %444 = vmatpush.msra.mxu0 %v183
        %445 = vmatpush.msra.mxu0 %v181
        %446 = vmatpush.msra.mxu0 %v179
        %447 = vmatpush.msra.mxu0 %v177
        %448 = vmatpush.msra.mxu0 %v175
        %449 = vmatpush.msra.mxu0 %v173
        %450 = vmatmul.f32.gmra.mxu0 %v163
        %v451 = vpop.f32.mrf.mxu0
        %v452 = vadd.f32 %v392, %v451
        %453 = vdwg.mxu0
        %454 = vmatpush.msra.mxu0 %v235
        %455 = vmatpush.msra.mxu0 %v233
        %456 = vmatpush.msra.mxu0 %v231
        %457 = vmatpush.msra.mxu0 %v229
        %458 = vmatpush.msra.mxu0 %v227
        %459 = vmatpush.msra.mxu0 %v225
        %460 = vmatpush.msra.mxu0 %v223
        %461 = vmatpush.msra.mxu0 %v221
        %462 = vmatpush.msra.mxu0 %v219
        %463 = vmatpush.msra.mxu0 %v217
        %464 = vmatpush.msra.mxu0 %v215
        %465 = vmatpush.msra.mxu0 %v213
        %466 = vmatpush.msra.mxu0 %v211
        %467 = vmatpush.msra.mxu0 %v209
        %468 = vmatpush.msra.mxu0 %v207
        %469 = vmatpush.msra.mxu0 %v205
        %470 = vmatmul.f32.gmra.mxu0 %v166
        %v471 = vpop.f32.mrf.mxu0
        %v472 = vadd.f32 %v452, %v471
        %473 = vdwg.mxu0
        %s474 = sadd.s32 0, 2
        %s475 = smul.u32 %s474, 256
        %s476 = smul.u32 %s474, 2
        %s477 = sadd.s32 %s156, %s476
        %s478 = scalar_lea.vmem [#allocation3], %s477
        %v479 = vld [vmem:[%s478] sm:$0xff]
        %s480 = sadd.s32 %s477, 1
        %s481 = scalar_lea.vmem [#allocation3], %s480
        %v482 = vld [vmem:[%s481] sm:$0xff]
        %s483 = sshra.s32 %s475, 3
        %s484 = sand.u32 %s475, 7
        %s485 = smul.u32 %s483, 2
        %s486 = smul.addr %s485, 8
        %s487 = scalar_lea.vmem [#allocation6], %s486
        %v488 = vld [vmem:[%s487] sm:$0xff]
        %v489 = vld [vmem:[%s487 + $0x8] sm:$0xff]
        %v490 = vld [vmem:[%s487 + $0x10] sm:$0xff]
        %v491 = vld [vmem:[%s487 + $0x18] sm:$0xff]
        %v492 = vld [vmem:[%s487 + $0x20] sm:$0xff]
        %v493 = vld [vmem:[%s487 + $0x28] sm:$0xff]
        %v494 = vld [vmem:[%s487 + $0x30] sm:$0xff]
        %v495 = vld [vmem:[%s487 + $0x38] sm:$0xff]
        %v496 = vld [vmem:[%s487 + $0x40] sm:$0xff]
        %v497 = vld [vmem:[%s487 + $0x48] sm:$0xff]
        %v498 = vld [vmem:[%s487 + $0x50] sm:$0xff]
        %v499 = vld [vmem:[%s487 + $0x58] sm:$0xff]
        %v500 = vld [vmem:[%s487 + $0x60] sm:$0xff]
        %v501 = vld [vmem:[%s487 + $0x68] sm:$0xff]
        %v502 = vld [vmem:[%s487 + $0x70] sm:$0xff]
        %v503 = vld [vmem:[%s487 + $0x78] sm:$0xff]
        %v504 = vld [vmem:[%s487 + $0x80] sm:$0xff]
        %v505 = vld [vmem:[%s487 + $0x88] sm:$0xff]
        %v506 = vld [vmem:[%s487 + $0x90] sm:$0xff]
        %v507 = vld [vmem:[%s487 + $0x98] sm:$0xff]
        %v508 = vld [vmem:[%s487 + $0xa0] sm:$0xff]
        %v509 = vld [vmem:[%s487 + $0xa8] sm:$0xff]
        %v510 = vld [vmem:[%s487 + $0xb0] sm:$0xff]
        %v511 = vld [vmem:[%s487 + $0xb8] sm:$0xff]
        %v512 = vld [vmem:[%s487 + $0xc0] sm:$0xff]
        %v513 = vld [vmem:[%s487 + $0xc8] sm:$0xff]
        %v514 = vld [vmem:[%s487 + $0xd0] sm:$0xff]
        %v515 = vld [vmem:[%s487 + $0xd8] sm:$0xff]
        %v516 = vld [vmem:[%s487 + $0xe0] sm:$0xff]
        %v517 = vld [vmem:[%s487 + $0xe8] sm:$0xff]
        %v518 = vld [vmem:[%s487 + $0xf0] sm:$0xff]
        %v519 = vld [vmem:[%s487 + $0xf8] sm:$0xff]
        %v520 = vld [vmem:[%s487 + $0x100] sm:$0xff]
        %v521 = vld [vmem:[%s487 + $0x108] sm:$0xff]
        %v522 = vld [vmem:[%s487 + $0x110] sm:$0xff]
        %v523 = vld [vmem:[%s487 + $0x118] sm:$0xff]
        %v524 = vld [vmem:[%s487 + $0x120] sm:$0xff]
        %v525 = vld [vmem:[%s487 + $0x128] sm:$0xff]
        %v526 = vld [vmem:[%s487 + $0x130] sm:$0xff]
        %v527 = vld [vmem:[%s487 + $0x138] sm:$0xff]
        %v528 = vld [vmem:[%s487 + $0x140] sm:$0xff]
        %v529 = vld [vmem:[%s487 + $0x148] sm:$0xff]
        %v530 = vld [vmem:[%s487 + $0x150] sm:$0xff]
        %v531 = vld [vmem:[%s487 + $0x158] sm:$0xff]
        %v532 = vld [vmem:[%s487 + $0x160] sm:$0xff]
        %v533 = vld [vmem:[%s487 + $0x168] sm:$0xff]
        %v534 = vld [vmem:[%s487 + $0x170] sm:$0xff]
        %v535 = vld [vmem:[%s487 + $0x178] sm:$0xff]
        %v536 = vld [vmem:[%s487 + $0x180] sm:$0xff]
        %v537 = vld [vmem:[%s487 + $0x188] sm:$0xff]
        %v538 = vld [vmem:[%s487 + $0x190] sm:$0xff]
        %v539 = vld [vmem:[%s487 + $0x198] sm:$0xff]
        %v540 = vld [vmem:[%s487 + $0x1a0] sm:$0xff]
        %v541 = vld [vmem:[%s487 + $0x1a8] sm:$0xff]
        %v542 = vld [vmem:[%s487 + $0x1b0] sm:$0xff]
        %v543 = vld [vmem:[%s487 + $0x1b8] sm:$0xff]
        %v544 = vld [vmem:[%s487 + $0x1c0] sm:$0xff]
        %v545 = vld [vmem:[%s487 + $0x1c8] sm:$0xff]
        %v546 = vld [vmem:[%s487 + $0x1d0] sm:$0xff]
        %v547 = vld [vmem:[%s487 + $0x1d8] sm:$0xff]
        %v548 = vld [vmem:[%s487 + $0x1e0] sm:$0xff]
        %v549 = vld [vmem:[%s487 + $0x1e8] sm:$0xff]
        %v550 = vld [vmem:[%s487 + $0x1f0] sm:$0xff]
        %v551 = vld [vmem:[%s487 + $0x1f8] sm:$0xff]
        %552 = vmatpush.msra.mxu0 %v518
        %553 = vmatpush.msra.mxu0 %v516
        %554 = vmatpush.msra.mxu0 %v514
        %555 = vmatpush.msra.mxu0 %v512
        %556 = vmatpush.msra.mxu0 %v510
        %557 = vmatpush.msra.mxu0 %v508
        %558 = vmatpush.msra.mxu0 %v506
        %559 = vmatpush.msra.mxu0 %v504
        %560 = vmatpush.msra.mxu0 %v502
        %561 = vmatpush.msra.mxu0 %v500
        %562 = vmatpush.msra.mxu0 %v498
        %563 = vmatpush.msra.mxu0 %v496
        %564 = vmatpush.msra.mxu0 %v494
        %565 = vmatpush.msra.mxu0 %v492
        %566 = vmatpush.msra.mxu0 %v490
        %567 = vmatpush.msra.mxu0 %v488
        %568 = vmatmul.f32.gmra.mxu0 %v479
        %v569 = vpop.f32.mrf.mxu0
        %v570 = vadd.f32 0.0, %v569
        %571 = vdwg.mxu0
        %572 = vmatpush.msra.mxu0 %v550
        %573 = vmatpush.msra.mxu0 %v548
        %574 = vmatpush.msra.mxu0 %v546
        %575 = vmatpush.msra.mxu0 %v544
        %576 = vmatpush.msra.mxu0 %v542
        %577 = vmatpush.msra.mxu0 %v540
        %578 = vmatpush.msra.mxu0 %v538
        %579 = vmatpush.msra.mxu0 %v536
        %580 = vmatpush.msra.mxu0 %v534
        %581 = vmatpush.msra.mxu0 %v532
        %582 = vmatpush.msra.mxu0 %v530
        %583 = vmatpush.msra.mxu0 %v528
        %584 = vmatpush.msra.mxu0 %v526
        %585 = vmatpush.msra.mxu0 %v524
        %586 = vmatpush.msra.mxu0 %v522
        %587 = vmatpush.msra.mxu0 %v520
        %588 = vmatmul.f32.gmra.mxu0 %v482
        %v589 = vpop.f32.mrf.mxu0
        %v590 = vadd.f32 %v570, %v589
        %591 = vdwg.mxu0
        %592 = vmatpush.msra.mxu0 %v519
        %593 = vmatpush.msra.mxu0 %v517
        %594 = vmatpush.msra.mxu0 %v515
        %595 = vmatpush.msra.mxu0 %v513
        %596 = vmatpush.msra.mxu0 %v511
        %597 = vmatpush.msra.mxu0 %v509
        %598 = vmatpush.msra.mxu0 %v507
        %599 = vmatpush.msra.mxu0 %v505
        %600 = vmatpush.msra.mxu0 %v503
        %601 = vmatpush.msra.mxu0 %v501
        %602 = vmatpush.msra.mxu0 %v499
        %603 = vmatpush.msra.mxu0 %v497
        %604 = vmatpush.msra.mxu0 %v495
        %605 = vmatpush.msra.mxu0 %v493
        %606 = vmatpush.msra.mxu0 %v491
        %607 = vmatpush.msra.mxu0 %v489
        %608 = vmatmul.f32.gmra.mxu0 %v479
        %v609 = vpop.f32.mrf.mxu0
        %v610 = vadd.f32 0.0, %v609
        %611 = vdwg.mxu0
        %612 = vmatpush.msra.mxu0 %v551
        %613 = vmatpush.msra.mxu0 %v549
        %614 = vmatpush.msra.mxu0 %v547
        %615 = vmatpush.msra.mxu0 %v545
        %616 = vmatpush.msra.mxu0 %v543
        %617 = vmatpush.msra.mxu0 %v541
        %618 = vmatpush.msra.mxu0 %v539
        %619 = vmatpush.msra.mxu0 %v537
        %620 = vmatpush.msra.mxu0 %v535
        %621 = vmatpush.msra.mxu0 %v533
        %622 = vmatpush.msra.mxu0 %v531
        %623 = vmatpush.msra.mxu0 %v529
        %624 = vmatpush.msra.mxu0 %v527
        %625 = vmatpush.msra.mxu0 %v525
        %626 = vmatpush.msra.mxu0 %v523
        %627 = vmatpush.msra.mxu0 %v521
        %628 = vmatmul.f32.gmra.mxu0 %v482
        %v629 = vpop.f32.mrf.mxu0
        %v630 = vadd.f32 %v610, %v629
        %631 = vdwg.mxu0
        %v632 = vadd.f32 %v432, %v590
        %v633 = vadd.f32 %v472, %v630
        %s634 = sadd.s32 0, 3
        %s635 = smul.u32 %s634, 256
        %s636 = smul.u32 %s634, 2
        %s637 = sadd.s32 %s156, %s636
        %s638 = scalar_lea.vmem [#allocation3], %s637
        %v639 = vld [vmem:[%s638] sm:$0xff]
        %s640 = sadd.s32 %s637, 1
        %s641 = scalar_lea.vmem [#allocation3], %s640
        %v642 = vld [vmem:[%s641] sm:$0xff]
        %s643 = sshra.s32 %s635, 3
        %s644 = sand.u32 %s635, 7
        %s645 = smul.u32 %s643, 2
        %s646 = smul.addr %s645, 8
        %s647 = scalar_lea.vmem [#allocation6], %s646
        %v648 = vld [vmem:[%s647] sm:$0xff]
        %v649 = vld [vmem:[%s647 + $0x8] sm:$0xff]
        %v650 = vld [vmem:[%s647 + $0x10] sm:$0xff]
        %v651 = vld [vmem:[%s647 + $0x18] sm:$0xff]
        %v652 = vld [vmem:[%s647 + $0x20] sm:$0xff]
        %v653 = vld [vmem:[%s647 + $0x28] sm:$0xff]
        %v654 = vld [vmem:[%s647 + $0x30] sm:$0xff]
        %v655 = vld [vmem:[%s647 + $0x38] sm:$0xff]
        %v656 = vld [vmem:[%s647 + $0x40] sm:$0xff]
        %v657 = vld [vmem:[%s647 + $0x48] sm:$0xff]
        %v658 = vld [vmem:[%s647 + $0x50] sm:$0xff]
        %v659 = vld [vmem:[%s647 + $0x58] sm:$0xff]
        %v660 = vld [vmem:[%s647 + $0x60] sm:$0xff]
        %v661 = vld [vmem:[%s647 + $0x68] sm:$0xff]
        %v662 = vld [vmem:[%s647 + $0x70] sm:$0xff]
        %v663 = vld [vmem:[%s647 + $0x78] sm:$0xff]
        %v664 = vld [vmem:[%s647 + $0x80] sm:$0xff]
        %v665 = vld [vmem:[%s647 + $0x88] sm:$0xff]
        %v666 = vld [vmem:[%s647 + $0x90] sm:$0xff]
        %v667 = vld [vmem:[%s647 + $0x98] sm:$0xff]
        %v668 = vld [vmem:[%s647 + $0xa0] sm:$0xff]
        %v669 = vld [vmem:[%s647 + $0xa8] sm:$0xff]
        %v670 = vld [vmem:[%s647 + $0xb0] sm:$0xff]
        %v671 = vld [vmem:[%s647 + $0xb8] sm:$0xff]
        %v672 = vld [vmem:[%s647 + $0xc0] sm:$0xff]
        %v673 = vld [vmem:[%s647 + $0xc8] sm:$0xff]
        %v674 = vld [vmem:[%s647 + $0xd0] sm:$0xff]
        %v675 = vld [vmem:[%s647 + $0xd8] sm:$0xff]
        %v676 = vld [vmem:[%s647 + $0xe0] sm:$0xff]
        %v677 = vld [vmem:[%s647 + $0xe8] sm:$0xff]
        %v678 = vld [vmem:[%s647 + $0xf0] sm:$0xff]
        %v679 = vld [vmem:[%s647 + $0xf8] sm:$0xff]
        %v680 = vld [vmem:[%s647 + $0x100] sm:$0xff]
        %v681 = vld [vmem:[%s647 + $0x108] sm:$0xff]
        %v682 = vld [vmem:[%s647 + $0x110] sm:$0xff]
        %v683 = vld [vmem:[%s647 + $0x118] sm:$0xff]
        %v684 = vld [vmem:[%s647 + $0x120] sm:$0xff]
        %v685 = vld [vmem:[%s647 + $0x128] sm:$0xff]
        %v686 = vld [vmem:[%s647 + $0x130] sm:$0xff]
        %v687 = vld [vmem:[%s647 + $0x138] sm:$0xff]
        %v688 = vld [vmem:[%s647 + $0x140] sm:$0xff]
        %v689 = vld [vmem:[%s647 + $0x148] sm:$0xff]
        %v690 = vld [vmem:[%s647 + $0x150] sm:$0xff]
        %v691 = vld [vmem:[%s647 + $0x158] sm:$0xff]
        %v692 = vld [vmem:[%s647 + $0x160] sm:$0xff]
        %v693 = vld [vmem:[%s647 + $0x168] sm:$0xff]
        %v694 = vld [vmem:[%s647 + $0x170] sm:$0xff]
        %v695 = vld [vmem:[%s647 + $0x178] sm:$0xff]
        %v696 = vld [vmem:[%s647 + $0x180] sm:$0xff]
        %v697 = vld [vmem:[%s647 + $0x188] sm:$0xff]
        %v698 = vld [vmem:[%s647 + $0x190] sm:$0xff]
        %v699 = vld [vmem:[%s647 + $0x198] sm:$0xff]
        %v700 = vld [vmem:[%s647 + $0x1a0] sm:$0xff]
        %v701 = vld [vmem:[%s647 + $0x1a8] sm:$0xff]
        %v702 = vld [vmem:[%s647 + $0x1b0] sm:$0xff]
        %v703 = vld [vmem:[%s647 + $0x1b8] sm:$0xff]
        %v704 = vld [vmem:[%s647 + $0x1c0] sm:$0xff]
        %v705 = vld [vmem:[%s647 + $0x1c8] sm:$0xff]
        %v706 = vld [vmem:[%s647 + $0x1d0] sm:$0xff]
        %v707 = vld [vmem:[%s647 + $0x1d8] sm:$0xff]
        %v708 = vld [vmem:[%s647 + $0x1e0] sm:$0xff]
        %v709 = vld [vmem:[%s647 + $0x1e8] sm:$0xff]
        %v710 = vld [vmem:[%s647 + $0x1f0] sm:$0xff]
        %v711 = vld [vmem:[%s647 + $0x1f8] sm:$0xff]
        %712 = vmatpush.msra.mxu0 %v678
        %713 = vmatpush.msra.mxu0 %v676
        %714 = vmatpush.msra.mxu0 %v674
        %715 = vmatpush.msra.mxu0 %v672
        %716 = vmatpush.msra.mxu0 %v670
        %717 = vmatpush.msra.mxu0 %v668
        %718 = vmatpush.msra.mxu0 %v666
        %719 = vmatpush.msra.mxu0 %v664
        %720 = vmatpush.msra.mxu0 %v662
        %721 = vmatpush.msra.mxu0 %v660
        %722 = vmatpush.msra.mxu0 %v658
        %723 = vmatpush.msra.mxu0 %v656
        %724 = vmatpush.msra.mxu0 %v654
        %725 = vmatpush.msra.mxu0 %v652
        %726 = vmatpush.msra.mxu0 %v650
        %727 = vmatpush.msra.mxu0 %v648
        %728 = vmatmul.f32.gmra.mxu0 %v639
        %v729 = vpop.f32.mrf.mxu0
        %v730 = vadd.f32 0.0, %v729
        %731 = vdwg.mxu0
        %732 = vmatpush.msra.mxu0 %v710
        %733 = vmatpush.msra.mxu0 %v708
        %734 = vmatpush.msra.mxu0 %v706
        %735 = vmatpush.msra.mxu0 %v704
        %736 = vmatpush.msra.mxu0 %v702
        %737 = vmatpush.msra.mxu0 %v700
        %738 = vmatpush.msra.mxu0 %v698
        %739 = vmatpush.msra.mxu0 %v696
        %740 = vmatpush.msra.mxu0 %v694
        %741 = vmatpush.msra.mxu0 %v692
        %742 = vmatpush.msra.mxu0 %v690
        %743 = vmatpush.msra.mxu0 %v688
        %744 = vmatpush.msra.mxu0 %v686
        %745 = vmatpush.msra.mxu0 %v684
        %746 = vmatpush.msra.mxu0 %v682
        %747 = vmatpush.msra.mxu0 %v680
        %748 = vmatmul.f32.gmra.mxu0 %v642
        %v749 = vpop.f32.mrf.mxu0
        %v750 = vadd.f32 %v730, %v749
        %751 = vdwg.mxu0
        %752 = vmatpush.msra.mxu0 %v679
        %753 = vmatpush.msra.mxu0 %v677
        %754 = vmatpush.msra.mxu0 %v675
        %755 = vmatpush.msra.mxu0 %v673
        %756 = vmatpush.msra.mxu0 %v671
        %757 = vmatpush.msra.mxu0 %v669
        %758 = vmatpush.msra.mxu0 %v667
        %759 = vmatpush.msra.mxu0 %v665
        %760 = vmatpush.msra.mxu0 %v663
        %761 = vmatpush.msra.mxu0 %v661
        %762 = vmatpush.msra.mxu0 %v659
        %763 = vmatpush.msra.mxu0 %v657
        %764 = vmatpush.msra.mxu0 %v655
        %765 = vmatpush.msra.mxu0 %v653
        %766 = vmatpush.msra.mxu0 %v651
        %767 = vmatpush.msra.mxu0 %v649
        %768 = vmatmul.f32.gmra.mxu0 %v639
        %v769 = vpop.f32.mrf.mxu0
        %v770 = vadd.f32 0.0, %v769
        %771 = vdwg.mxu0
        %772 = vmatpush.msra.mxu0 %v711
        %773 = vmatpush.msra.mxu0 %v709
        %774 = vmatpush.msra.mxu0 %v707
        %775 = vmatpush.msra.mxu0 %v705
        %776 = vmatpush.msra.mxu0 %v703
        %777 = vmatpush.msra.mxu0 %v701
        %778 = vmatpush.msra.mxu0 %v699
        %779 = vmatpush.msra.mxu0 %v697
        %780 = vmatpush.msra.mxu0 %v695
        %781 = vmatpush.msra.mxu0 %v693
        %782 = vmatpush.msra.mxu0 %v691
        %783 = vmatpush.msra.mxu0 %v689
        %784 = vmatpush.msra.mxu0 %v687
        %785 = vmatpush.msra.mxu0 %v685
        %786 = vmatpush.msra.mxu0 %v683
        %787 = vmatpush.msra.mxu0 %v681
        %788 = vmatmul.f32.gmra.mxu0 %v642
        %v789 = vpop.f32.mrf.mxu0
        %v790 = vadd.f32 %v770, %v789
        %791 = vdwg.mxu0
        %v792 = vadd.f32 %v632, %v750
        %v793 = vadd.f32 %v633, %v790
        %v794 = vld [vmem:[#allocation2] sm:$0xff]
        %v795 = vld [vmem:[#allocation2 + $0x8] sm:$0xff]
        %v796 = vadd.f32 %v794, %v792
        %v797 = vadd.f32 %v795, %v793
        %798 = vst [vmem:[#allocation2] sm:$0xff] %v796
        %799 = vst [vmem:[#allocation2 + $0x8] sm:$0xff] %v797
        %v800 = vld [vmem:[#allocation2] sm:$0xff]
        %v801 = vld [vmem:[#allocation2 + $0x8] sm:$0xff]
        %v802 = vmul.f32 %v800, %v800
        %v803 = vmul.f32 %v801, %v801
        %v804 = vadd.f32 %v802, %v803
        %v805 = vrsqrt.pop %v804
        %v806 = vmul.f32 %v805, %v804
        %v807 = vmul.f32 %v806, %v805
        %v808 = vmul.f32 0.5, %v807
        %v809 = vsub.f32 1.5, %v808
        %v810 = vmul.f32 %v805, %v809
        %v811 = vmul.f32 %v804, %v810
        %vm812 = vcmp.eq.f32.partialorder %v804, inf
        %v813 = vsel %vm812, %v804, %v811
        %vm814 = vcmp.eq.f32.partialorder %v804, 0.0
        %v815 = vand.u32 %v804, 2147483648
        %v816 = vsel %vm814, %v815, %v813
        %v817 = vadd.f32 %v816, 1.0
        %v818 = vlog2.pop %v817
        %v819 = vmul.f32 %v818, 0.6931472
        %v820 = vmul.f32 -0.5, %v816
        %v821 = vadd.f32 %v820, 1.0
        %v822 = vmul.f32 %v821, %v816
        %v823 = vand.u32 2147483647, %v816
        %vm824 = vcmp.lt.f32.partialorder %v823, 0.0004427343
        %v825 = vsel %vm824, %v822, %v819
        %826 = vst [vmem:[%s155] sm:$0xff] %v825
        %s827 = sand.u32 %s68, 1
        %s828 = scalar_lea.sflag [#allocation5], %s827
        %s829 = sand.u32 %s68, 1
        %s830 = smul.addr %s829, 8
        %s831 = scalar_lea.vmem [#allocation8], %s830
        // Predicated region
        $region37: #{tpu_custom_call.1} parent=27 // pred_check
          %p832 = pneg %p78
        $region38: #{tpu_custom_call.1} parent=27 // pred_check_branch
          %834 = sbr.rel (%p832) target = $region40
        $region39: #{tpu_custom_call.1} parent=27 // pred_region
          %836 = vsyncadd %s828, 0
          %s837 = smul.addr %s18, 8
          %s838 = scalar_lea.hbm %s2, %s837
          %s840 = sshll.u32 %s831, 4
          %s841 = int_to_ptr.vmem [resolvable:$true] %s840
          %s842 = sshll.u32 %s838, 4
          %s843 = int_to_ptr.hbm [resolvable:$true] %s842
          %845 = dma.vmem_to_hbm [thread:$0]  %s841, 128, %s843, %s828
        $region40: #{tpu_custom_call.1} parent=27 // pred_fallthru
          _
      $region28: #{tpu_custom_call.1} parent=5 // pred_fallthru
        _
      %p846 = scmp.le.s32.totalorder 2, %s13
      // Predicated region
      $region41: #{tpu_custom_call.1} parent=5 // pred_check
        %p847 = pneg %p846
      $region42: #{tpu_custom_call.1} parent=5 // pred_check_branch
        %849 = sbr.rel (%p847) target = $region44
      $region43: #{tpu_custom_call.1} parent=5 // pred_region
        %s850 = ssub.s32 %s13, 2
        // Predicated region
        $region45: #{tpu_custom_call.1} parent=43 // pred_check
          %p851 = pneg %p84
        $region46: #{tpu_custom_call.1} parent=43 // pred_check_branch
          %853 = sbr.rel (%p851) target = $region48
        $region47: #{tpu_custom_call.1} parent=43 // pred_region
          %s854 = sand.u32 %s69, 1
          %s855 = scalar_lea.sflag [#allocation5], %s854
          %s856 = sand.u32 %s69, 1
          %s857 = smul.addr %s856, 8
          %s858 = scalar_lea.vmem [#allocation8], %s857
          %860 = dma.done %s855, 128
        $region48: #{tpu_custom_call.1} parent=43 // pred_fallthru
          _
      $region44: #{tpu_custom_call.1} parent=5 // pred_fallthru
        _
    $region6: #{tpu_custom_call.1} parent=1 // loop_footer
      %s17 = sadd.s32 1, %s13
    $region7: #{tpu_custom_call.1} parent=1 // loop_footer_branch
      %12 = sbr.rel target = $region3
    $region8: #{tpu_custom_call.1} parent=1 // loop_exit
      _
    %861 = vsyncpa [#allocation4], 1
    %s862 = scalar_lea.sflag [#allocation4], 1
    %863 = vsyncpa %s862, 1
    %864 = vsyncpa [#allocation7], 1
    %865 = vsyncpa [#allocation5], 1
    %s866 = scalar_lea.sflag [#allocation5], 1
    %867 = vsyncpa %s866, 1

// kernel: tpu_custom_call.1
$region0: #{tpu_custom_call.1}
  #allocation0 [shape = 'u32[]', space=smem, size = 0x4, offset = 0x4, fixed_abs, tag = 'smem constant byte address 0x4 - core index']
  #allocation1 [shape = 'u32[72,128]{1,0:T(1,128)}', space=vmem, size = 0x9000, scoped, tag = 'internal scratch']
  #allocation2 [shape = 'f32[8,256]{1,0:T(8,128)}', space=vmem, size = 0x2000, scoped, tag = 'scratch operand']
  %s0 = inlined_call_operand.hbm [shape: f32[24,128], index: 0, kind: input, shape index: {}]
  %s1 = inlined_call_operand.hbm [shape: f32[1024,256], index: 1, kind: input, shape index: {}]
  %s2 = inlined_call_operand.hbm [shape: f32[16,128], index: 2, kind: output, shape index: {}]
  %s3 = sld [smem:[#allocation0]]
  $region49: #{tpu_custom_call.1} parent=0
    _
  %s5 = ssub.s32 1, %s3
  %s6 = scalar_select 0, %s5, %s3
  $region1: #{tpu_custom_call.1} parent=0
    #allocation3 [shape = 'u8[12288]{0}', space=vmem, size = 0x3000, scoped, tag = 'input window, operand 0, single buffered']
    #allocation4 [shape = 's32[2]{0}', space=sflag, size = 0x8, scoped, tag = 'scoped memory for tpu_custom_call.1']
    #allocation5 [shape = 's32[2]{0}', space=sflag, size = 0x8, scoped, tag = 'scoped memory for tpu_custom_call.1']
    #allocation6 [shape = 'u8[1048576]{0}', space=vmem, size = 0x100000, scoped, tag = 'input window, operand 1, single buffered']
    #allocation7 [shape = 's32[1]{0}', space=sflag, size = 0x4, scoped, tag = 'scoped memory for tpu_custom_call.1']
    #allocation8 [shape = 'u8[8192]{0}', space=vmem, size = 0x2000, scoped, tag = 'output window, operand 0']
    %7 = vsyncpa [#allocation4], 0
    %8 = vsyncpa [#allocation7], 0
    %9 = vsyncpa [#allocation5], 0
    %s10 = scalar_lea.sflag [#allocation5], 1
    %11 = vsyncpa %s10, 0
    loop: start=0, step=1, limit=4
    $region2: #{tpu_custom_call.1} parent=1 // loop_pre_header
      _
    $region3: #{tpu_custom_call.1} parent=1 // loop_header
      %s13 = sphi 0, %s17
      %p14 = scmp.ge.s32.totalorder %s13, 4
      %s21 = sphi 0, %s21
      %s23 = sphi 0, %s21
      %s24 = sphi 0, %s23
      %s38 = sphi 0, %s24
      %s42 = sphi 0, %s42
      %s44 = sphi 0, %s42
      %s45 = sphi 0, %s44
      %s59 = sphi 0, %s45
      %s65 = sphi 0, %s67
      %s68 = sphi 0, %s65
      %s69 = sphi 0, %s68
      %s85 = sphi 0, %s69
    $region4: #{tpu_custom_call.1} parent=1 // loop_header_branch
      %16 = sbr.rel (%p14) target = $region8
    $region5: #{tpu_custom_call.1} parent=1 // loop_body
      %s18 = ssub.s32 %s13, 1
      %s19 = ssub.s32 %s13, 2
      %s20 = sadd.s32 %s13, 1
      %s22 = sadd.s32 %s21, 1
      %p25 = scmp.eq.s32.totalorder %s13, 1
      %p26 = scmp.ne.s32.totalorder %s21, %s23
      %p27 = scmp.eq.s32.totalorder %s13, 0
      %p28 = por %p26, %p27
      %p29 = scmp.ne.s32.totalorder %s21, %s23
      %p30 = scmp.eq.s32.totalorder %s18, 1
      %p31 = por %p29, %p30
      %p32 = scmp.ne.s32.totalorder %s23, %s24
      %p33 = scmp.eq.s32.totalorder %s18, 0
      %p34 = por %p32, %p33
      %p35 = scmp.ne.s32.totalorder %s23, %s24
      %p36 = scmp.eq.s32.totalorder %s19, 1
      %p37 = por %p35, %p36
      %p39 = scmp.ne.s32.totalorder %s24, %s38
      %p40 = scmp.eq.s32.totalorder %s19, 0
      %p41 = por %p39, %p40
      %s43 = sadd.s32 %s42, 1
      %p46 = scmp.eq.s32.totalorder %s13, 1
      %p47 = scmp.ne.s32.totalorder %s42, %s44
      %p48 = scmp.eq.s32.totalorder %s13, 0
      %p49 = por %p47, %p48
      %p50 = scmp.ne.s32.totalorder %s42, %s44
      %p51 = scmp.eq.s32.totalorder %s18, 1
      %p52 = por %p50, %p51
      %p53 = scmp.ne.s32.totalorder %s44, %s45
      %p54 = scmp.eq.s32.totalorder %s18, 0
      %p55 = por %p53, %p54
      %p56 = scmp.ne.s32.totalorder %s44, %s45
      %p57 = scmp.eq.s32.totalorder %s19, 1
      %p58 = por %p56, %p57
      %p60 = scmp.ne.s32.totalorder %s45, %s59
      %p61 = scmp.eq.s32.totalorder %s19, 0
      %p62 = por %p60, %p61
      %s63 = ssub.s32 %s13, %s20
      %p64 = scmp.eq.s32.totalorder %s63, 0
      %s66 = sadd.s32 %s65, 1
      %s67 = scalar_select %p64, %s65, %s66
      %p70 = pneg %p64
      %p71 = scmp.eq.s32.totalorder %s13, 1
      %p72 = por %p70, %p71
      %p73 = scmp.ne.s32.totalorder %s65, %s68
      %p74 = scmp.eq.s32.totalorder %s13, 0
      %p75 = por %p73, %p74
      %p76 = scmp.ne.s32.totalorder %s65, %s68
      %p77 = scmp.eq.s32.totalorder %s18, 1
      %p78 = por %p76, %p77
      %p79 = scmp.ne.s32.totalorder %s68, %s69
      %p80 = scmp.eq.s32.totalorder %s18, 0
      %p81 = por %p79, %p80
      %p82 = scmp.ne.s32.totalorder %s68, %s69
      %p83 = scmp.eq.s32.totalorder %s19, 1
      %p84 = por %p82, %p83
      %p86 = scmp.ne.s32.totalorder %s69, %s85
      %p87 = scmp.eq.s32.totalorder %s19, 0
      %p88 = por %p86, %p87
      %p89 = scmp.le.s32.totalorder 1, %s13
      %p90 = scmp.lt.s32.totalorder %s13, 3
      %p91 = pnand %p89, %p90
      %p92 = pneg %p91
      // Predicated region
      $region9: #{tpu_custom_call.1} parent=5 // pred_check
        _
      $region10: #{tpu_custom_call.1} parent=5 // pred_check_branch
        %94 = sbr.rel (%p91) target = $region12
      $region11: #{tpu_custom_call.1} parent=5 // pred_region
        %s95 = ssub.s32 %s13, 1
        // Predicated region
        $region13: #{tpu_custom_call.1} parent=11 // pred_check
          %p96 = pneg %p34
        $region14: #{tpu_custom_call.1} parent=11 // pred_check_branch
          %98 = sbr.rel (%p96) target = $region16
        $region15: #{tpu_custom_call.1} parent=11 // pred_region
          %100 = vsyncadd [#allocation4], 0
          %s101 = sshll.u32 %s0, 4
          %s102 = int_to_ptr.hbm [resolvable:$true] %s101
          %s103 = sshll.u32 [#allocation3], 4
          %s104 = int_to_ptr.vmem [resolvable:$true] %s103
          %109 = dma.hbm_to_vmem [thread:$0]  %s102, 384, %s104, [#allocation4], 128, 128, 8
        $region16: #{tpu_custom_call.1} parent=11 // pred_fallthru
          _
        // Predicated region
        $region17: #{tpu_custom_call.1} parent=11 // pred_check
          %p110 = pneg %p55
        $region18: #{tpu_custom_call.1} parent=11 // pred_check_branch
          %112 = sbr.rel (%p110) target = $region20
        $region19: #{tpu_custom_call.1} parent=11 // pred_region
          %114 = vsyncadd [#allocation7], 0
          %s115 = sshll.u32 %s1, 4
          %s116 = int_to_ptr.hbm [resolvable:$true] %s115
          %s117 = sshll.u32 [#allocation6], 4
          %s118 = int_to_ptr.vmem [resolvable:$true] %s117
          %123 = dma.hbm_to_vmem [thread:$0]  %s116, 32768, %s118, [#allocation7], 256, 256, 16
        $region20: #{tpu_custom_call.1} parent=11 // pred_fallthru
          _
      $region12: #{tpu_custom_call.1} parent=5 // pred_fallthru
        _
      %p124 = scmp.lt.s32.totalorder %s13, 2
      // Predicated region
      $region21: #{tpu_custom_call.1} parent=5 // pred_check
        %p125 = pneg %p124
      $region22: #{tpu_custom_call.1} parent=5 // pred_check_branch
        %127 = sbr.rel (%p125) target = $region24
      $region23: #{tpu_custom_call.1} parent=5 // pred_region
        _
      $region24: #{tpu_custom_call.1} parent=5 // pred_fallthru
        _
      %p128 = scmp.le.s32.totalorder 1, %s13
      %p129 = scmp.lt.s32.totalorder %s13, 3
      %p130 = pnand %p128, %p129
      %p131 = pneg %p130
      // Predicated region
      $region25: #{tpu_custom_call.1} parent=5 // pred_check
        _
      $region26: #{tpu_custom_call.1} parent=5 // pred_check_branch
        %133 = sbr.rel (%p130) target = $region28
      $region27: #{tpu_custom_call.1} parent=5 // pred_region
        %s134 = ssub.s32 %s13, 1
        // Predicated region
        $region29: #{tpu_custom_call.1} parent=27 // pred_check
          %p135 = pneg %p34
        $region30: #{tpu_custom_call.1} parent=27 // pred_check_branch
          %137 = sbr.rel (%p135) target = $region32
        $region31: #{tpu_custom_call.1} parent=27 // pred_region
          %139 = dma.done [#allocation4], 384
        $region32: #{tpu_custom_call.1} parent=27 // pred_fallthru
          _
        // Predicated region
        $region33: #{tpu_custom_call.1} parent=27 // pred_check
          %p140 = pneg %p55
        $region34: #{tpu_custom_call.1} parent=27 // pred_check_branch
          %142 = sbr.rel (%p140) target = $region36
        $region35: #{tpu_custom_call.1} parent=27 // pred_region
          %144 = dma.done [#allocation7], 32768
        $region36: #{tpu_custom_call.1} parent=27 // pred_fallthru
          _
        %p145 = pneg %p34
        %p146 = pneg %p31
        %p147 = pneg %p55
        %p148 = pneg %p52
        %p149 = pneg %p81
        %p150 = pneg %p78
        %s151 = sand.u32 %s68, 1
        %s152 = scalar_lea.sflag [#allocation5], %s151
        %s153 = sand.u32 %s68, 1
        %s154 = smul.addr %s153, 8
        %s155 = scalar_lea.vmem [#allocation8], %s154
        %s156 = smul.u32 %s18, 8
        %157 = vst [vmem:[#allocation2] sm:$0xff] 0.0
        %158 = vst [vmem:[#allocation2 + $0x8] sm:$0xff] 0.0
        %s159 = smul.u32 0, 256
        %s160 = smul.u32 0, 2
        %s161 = sadd.s32 %s156, %s160
        %s162 = scalar_lea.vmem [#allocation3], %s161
        %v163 = vld [vmem:[%s162] sm:$0xff]
        %s164 = sadd.s32 %s161, 1
        %s165 = scalar_lea.vmem [#allocation3], %s164
        %v166 = vld [vmem:[%s165] sm:$0xff]
        %s167 = sshra.s32 %s159, 3
        %s168 = sand.u32 %s159, 7
        %s169 = smul.u32 %s167, 2
        %s170 = smul.addr %s169, 8
        %s171 = scalar_lea.vmem [#allocation6], %s170
        %v172 = vld [vmem:[%s171] sm:$0xff]
        %v173 = vld [vmem:[%s171 + $0x8] sm:$0xff]
        %v174 = vld [vmem:[%s171 + $0x10] sm:$0xff]
        %v175 = vld [vmem:[%s171 + $0x18] sm:$0xff]
        %v176 = vld [vmem:[%s171 + $0x20] sm:$0xff]
        %v177 = vld [vmem:[%s171 + $0x28] sm:$0xff]
        %v178 = vld [vmem:[%s171 + $0x30] sm:$0xff]
        %v179 = vld [vmem:[%s171 + $0x38] sm:$0xff]
        %v180 = vld [vmem:[%s171 + $0x40] sm:$0xff]
        %v181 = vld [vmem:[%s171 + $0x48] sm:$0xff]
        %v182 = vld [vmem:[%s171 + $0x50] sm:$0xff]
        %v183 = vld [vmem:[%s171 + $0x58] sm:$0xff]
        %v184 = vld [vmem:[%s171 + $0x60] sm:$0xff]
        %v185 = vld [vmem:[%s171 + $0x68] sm:$0xff]
        %v186 = vld [vmem:[%s171 + $0x70] sm:$0xff]
        %v187 = vld [vmem:[%s171 + $0x78] sm:$0xff]
        %v188 = vld [vmem:[%s171 + $0x80] sm:$0xff]
        %v189 = vld [vmem:[%s171 + $0x88] sm:$0xff]
        %v190 = vld [vmem:[%s171 + $0x90] sm:$0xff]
        %v191 = vld [vmem:[%s171 + $0x98] sm:$0xff]
        %v192 = vld [vmem:[%s171 + $0xa0] sm:$0xff]
        %v193 = vld [vmem:[%s171 + $0xa8] sm:$0xff]
        %v194 = vld [vmem:[%s171 + $0xb0] sm:$0xff]
        %v195 = vld [vmem:[%s171 + $0xb8] sm:$0xff]
        %v196 = vld [vmem:[%s171 + $0xc0] sm:$0xff]
        %v197 = vld [vmem:[%s171 + $0xc8] sm:$0xff]
        %v198 = vld [vmem:[%s171 + $0xd0] sm:$0xff]
        %v199 = vld [vmem:[%s171 + $0xd8] sm:$0xff]
        %v200 = vld [vmem:[%s171 + $0xe0] sm:$0xff]
        %v201 = vld [vmem:[%s171 + $0xe8] sm:$0xff]
        %v202 = vld [vmem:[%s171 + $0xf0] sm:$0xff]
        %v203 = vld [vmem:[%s171 + $0xf8] sm:$0xff]
        %v204 = vld [vmem:[%s171 + $0x100] sm:$0xff]
        %v205 = vld [vmem:[%s171 + $0x108] sm:$0xff]
        %v206 = vld [vmem:[%s171 + $0x110] sm:$0xff]
        %v207 = vld [vmem:[%s171 + $0x118] sm:$0xff]
        %v208 = vld [vmem:[%s171 + $0x120] sm:$0xff]
        %v209 = vld [vmem:[%s171 + $0x128] sm:$0xff]
        %v210 = vld [vmem:[%s171 + $0x130] sm:$0xff]
        %v211 = vld [vmem:[%s171 + $0x138] sm:$0xff]
        %v212 = vld [vmem:[%s171 + $0x140] sm:$0xff]
        %v213 = vld [vmem:[%s171 + $0x148] sm:$0xff]
        %v214 = vld [vmem:[%s171 + $0x150] sm:$0xff]
        %v215 = vld [vmem:[%s171 + $0x158] sm:$0xff]
        %v216 = vld [vmem:[%s171 + $0x160] sm:$0xff]
        %v217 = vld [vmem:[%s171 + $0x168] sm:$0xff]
        %v218 = vld [vmem:[%s171 + $0x170] sm:$0xff]
        %v219 = vld [vmem:[%s171 + $0x178] sm:$0xff]
        %v220 = vld [vmem:[%s171 + $0x180] sm:$0xff]
        %v221 = vld [vmem:[%s171 + $0x188] sm:$0xff]
        %v222 = vld [vmem:[%s171 + $0x190] sm:$0xff]
        %v223 = vld [vmem:[%s171 + $0x198] sm:$0xff]
        %v224 = vld [vmem:[%s171 + $0x1a0] sm:$0xff]
        %v225 = vld [vmem:[%s171 + $0x1a8] sm:$0xff]
        %v226 = vld [vmem:[%s171 + $0x1b0] sm:$0xff]
        %v227 = vld [vmem:[%s171 + $0x1b8] sm:$0xff]
        %v228 = vld [vmem:[%s171 + $0x1c0] sm:$0xff]
        %v229 = vld [vmem:[%s171 + $0x1c8] sm:$0xff]
        %v230 = vld [vmem:[%s171 + $0x1d0] sm:$0xff]
        %v231 = vld [vmem:[%s171 + $0x1d8] sm:$0xff]
        %v232 = vld [vmem:[%s171 + $0x1e0] sm:$0xff]
        %v233 = vld [vmem:[%s171 + $0x1e8] sm:$0xff]
        %v234 = vld [vmem:[%s171 + $0x1f0] sm:$0xff]
        %v235 = vld [vmem:[%s171 + $0x1f8] sm:$0xff]
        %s236 = sadd.s32 0, 1
        %s237 = smul.u32 %s236, 256
        %s238 = smul.u32 %s236, 2
        %s239 = sadd.s32 %s156, %s238
        %s240 = scalar_lea.vmem [#allocation3], %s239
        %v241 = vld [vmem:[%s240] sm:$0xff]
        %s242 = sadd.s32 %s239, 1
        %s243 = scalar_lea.vmem [#allocation3], %s242
        %v244 = vld [vmem:[%s243] sm:$0xff]
        %s245 = sshra.s32 %s237, 3
        %s246 = sand.u32 %s237, 7
        %s247 = smul.u32 %s245, 2
        %s248 = smul.addr %s247, 8
        %s249 = scalar_lea.vmem [#allocation6], %s248
        %v250 = vld [vmem:[%s249] sm:$0xff]
        %v251 = vld [vmem:[%s249 + $0x8] sm:$0xff]
        %v252 = vld [vmem:[%s249 + $0x10] sm:$0xff]
        %v253 = vld [vmem:[%s249 + $0x18] sm:$0xff]
        %v254 = vld [vmem:[%s249 + $0x20] sm:$0xff]
        %v255 = vld [vmem:[%s249 + $0x28] sm:$0xff]
        %v256 = vld [vmem:[%s249 + $0x30] sm:$0xff]
        %v257 = vld [vmem:[%s249 + $0x38] sm:$0xff]
        %v258 = vld [vmem:[%s249 + $0x40] sm:$0xff]
        %v259 = vld [vmem:[%s249 + $0x48] sm:$0xff]
        %v260 = vld [vmem:[%s249 + $0x50] sm:$0xff]
        %v261 = vld [vmem:[%s249 + $0x58] sm:$0xff]
        %v262 = vld [vmem:[%s249 + $0x60] sm:$0xff]
        %v263 = vld [vmem:[%s249 + $0x68] sm:$0xff]
        %v264 = vld [vmem:[%s249 + $0x70] sm:$0xff]
        %v265 = vld [vmem:[%s249 + $0x78] sm:$0xff]
        %v266 = vld [vmem:[%s249 + $0x80] sm:$0xff]
        %v267 = vld [vmem:[%s249 + $0x88] sm:$0xff]
        %v268 = vld [vmem:[%s249 + $0x90] sm:$0xff]
        %v269 = vld [vmem:[%s249 + $0x98] sm:$0xff]
        %v270 = vld [vmem:[%s249 + $0xa0] sm:$0xff]
        %v271 = vld [vmem:[%s249 + $0xa8] sm:$0xff]
        %v272 = vld [vmem:[%s249 + $0xb0] sm:$0xff]
        %v273 = vld [vmem:[%s249 + $0xb8] sm:$0xff]
        %v274 = vld [vmem:[%s249 + $0xc0] sm:$0xff]
        %v275 = vld [vmem:[%s249 + $0xc8] sm:$0xff]
        %v276 = vld [vmem:[%s249 + $0xd0] sm:$0xff]
        %v277 = vld [vmem:[%s249 + $0xd8] sm:$0xff]
        %v278 = vld [vmem:[%s249 + $0xe0] sm:$0xff]
        %v279 = vld [vmem:[%s249 + $0xe8] sm:$0xff]
        %v280 = vld [vmem:[%s249 + $0xf0] sm:$0xff]
        %v281 = vld [vmem:[%s249 + $0xf8] sm:$0xff]
        %v282 = vld [vmem:[%s249 + $0x100] sm:$0xff]
        %v283 = vld [vmem:[%s249 + $0x108] sm:$0xff]
        %v284 = vld [vmem:[%s249 + $0x110] sm:$0xff]
        %v285 = vld [vmem:[%s249 + $0x118] sm:$0xff]
        %v286 = vld [vmem:[%s249 + $0x120] sm:$0xff]
        %v287 = vld [vmem:[%s249 + $0x128] sm:$0xff]
        %v288 = vld [vmem:[%s249 + $0x130] sm:$0xff]
        %v289 = vld [vmem:[%s249 + $0x138] sm:$0xff]
        %v290 = vld [vmem:[%s249 + $0x140] sm:$0xff]
        %v291 = vld [vmem:[%s249 + $0x148] sm:$0xff]
        %v292 = vld [vmem:[%s249 + $0x150] sm:$0xff]
        %v293 = vld [vmem:[%s249 + $0x158] sm:$0xff]
        %v294 = vld [vmem:[%s249 + $0x160] sm:$0xff]
        %v295 = vld [vmem:[%s249 + $0x168] sm:$0xff]
        %v296 = vld [vmem:[%s249 + $0x170] sm:$0xff]
        %v297 = vld [vmem:[%s249 + $0x178] sm:$0xff]
        %v298 = vld [vmem:[%s249 + $0x180] sm:$0xff]
        %v299 = vld [vmem:[%s249 + $0x188] sm:$0xff]
        %v300 = vld [vmem:[%s249 + $0x190] sm:$0xff]
        %v301 = vld [vmem:[%s249 + $0x198] sm:$0xff]
        %v302 = vld [vmem:[%s249 + $0x1a0] sm:$0xff]
        %v303 = vld [vmem:[%s249 + $0x1a8] sm:$0xff]
        %v304 = vld [vmem:[%s249 + $0x1b0] sm:$0xff]
        %v305 = vld [vmem:[%s249 + $0x1b8] sm:$0xff]
        %v306 = vld [vmem:[%s249 + $0x1c0] sm:$0xff]
        %v307 = vld [vmem:[%s249 + $0x1c8] sm:$0xff]
        %v308 = vld [vmem:[%s249 + $0x1d0] sm:$0xff]
        %v309 = vld [vmem:[%s249 + $0x1d8] sm:$0xff]
        %v310 = vld [vmem:[%s249 + $0x1e0] sm:$0xff]
        %v311 = vld [vmem:[%s249 + $0x1e8] sm:$0xff]
        %v312 = vld [vmem:[%s249 + $0x1f0] sm:$0xff]
        %v313 = vld [vmem:[%s249 + $0x1f8] sm:$0xff]
        %314 = vmatpush.msra.mxu0 %v280
        %315 = vmatpush.msra.mxu0 %v278
        %316 = vmatpush.msra.mxu0 %v276
        %317 = vmatpush.msra.mxu0 %v274
        %318 = vmatpush.msra.mxu0 %v272
        %319 = vmatpush.msra.mxu0 %v270
        %320 = vmatpush.msra.mxu0 %v268
        %321 = vmatpush.msra.mxu0 %v266
        %322 = vmatpush.msra.mxu0 %v264
        %323 = vmatpush.msra.mxu0 %v262
        %324 = vmatpush.msra.mxu0 %v260
        %325 = vmatpush.msra.mxu0 %v258
        %326 = vmatpush.msra.mxu0 %v256
        %327 = vmatpush.msra.mxu0 %v254
        %328 = vmatpush.msra.mxu0 %v252
        %329 = vmatpush.msra.mxu0 %v250
        %330 = vmatmul.f32.gmra.mxu0 %v241
        %v331 = vpop.f32.mrf.mxu0
        %v332 = vadd.f32 0.0, %v331
        %333 = vdwg.mxu0
        %334 = vmatpush.msra.mxu0 %v312
        %335 = vmatpush.msra.mxu0 %v310
        %336 = vmatpush.msra.mxu0 %v308
        %337 = vmatpush.msra.mxu0 %v306
        %338 = vmatpush.msra.mxu0 %v304
        %339 = vmatpush.msra.mxu0 %v302
        %340 = vmatpush.msra.mxu0 %v300
        %341 = vmatpush.msra.mxu0 %v298
        %342 = vmatpush.msra.mxu0 %v296
        %343 = vmatpush.msra.mxu0 %v294
        %344 = vmatpush.msra.mxu0 %v292
        %345 = vmatpush.msra.mxu0 %v290
        %346 = vmatpush.msra.mxu0 %v288
        %347 = vmatpush.msra.mxu0 %v286
        %348 = vmatpush.msra.mxu0 %v284
        %349 = vmatpush.msra.mxu0 %v282
        %350 = vmatmul.f32.gmra.mxu0 %v244
        %v351 = vpop.f32.mrf.mxu0
        %v352 = vadd.f32 %v332, %v351
        %353 = vdwg.mxu0
        %354 = vmatpush.msra.mxu0 %v281
        %355 = vmatpush.msra.mxu0 %v279
        %356 = vmatpush.msra.mxu0 %v277
        %357 = vmatpush.msra.mxu0 %v275
        %358 = vmatpush.msra.mxu0 %v273
        %359 = vmatpush.msra.mxu0 %v271
        %360 = vmatpush.msra.mxu0 %v269
        %361 = vmatpush.msra.mxu0 %v267
        %362 = vmatpush.msra.mxu0 %v265
        %363 = vmatpush.msra.mxu0 %v263
        %364 = vmatpush.msra.mxu0 %v261
        %365 = vmatpush.msra.mxu0 %v259
        %366 = vmatpush.msra.mxu0 %v257
        %367 = vmatpush.msra.mxu0 %v255
        %368 = vmatpush.msra.mxu0 %v253
        %369 = vmatpush.msra.mxu0 %v251
        %370 = vmatmul.f32.gmra.mxu0 %v241
        %v371 = vpop.f32.mrf.mxu0
        %v372 = vadd.f32 0.0, %v371
        %373 = vdwg.mxu0
        %374 = vmatpush.msra.mxu0 %v313
        %375 = vmatpush.msra.mxu0 %v311
        %376 = vmatpush.msra.mxu0 %v309
        %377 = vmatpush.msra.mxu0 %v307
        %378 = vmatpush.msra.mxu0 %v305
        %379 = vmatpush.msra.mxu0 %v303
        %380 = vmatpush.msra.mxu0 %v301
        %381 = vmatpush.msra.mxu0 %v299
        %382 = vmatpush.msra.mxu0 %v297
        %383 = vmatpush.msra.mxu0 %v295
        %384 = vmatpush.msra.mxu0 %v293
        %385 = vmatpush.msra.mxu0 %v291
        %386 = vmatpush.msra.mxu0 %v289
        %387 = vmatpush.msra.mxu0 %v287
        %388 = vmatpush.msra.mxu0 %v285
        %389 = vmatpush.msra.mxu0 %v283
        %390 = vmatmul.f32.gmra.mxu0 %v244
        %v391 = vpop.f32.mrf.mxu0
        %v392 = vadd.f32 %v372, %v391
        %393 = vdwg.mxu0
        %394 = vmatpush.msra.mxu0 %v202
        %395 = vmatpush.msra.mxu0 %v200
        %396 = vmatpush.msra.mxu0 %v198
        %397 = vmatpush.msra.mxu0 %v196
        %398 = vmatpush.msra.mxu0 %v194
        %399 = vmatpush.msra.mxu0 %v192
        %400 = vmatpush.msra.mxu0 %v190
        %401 = vmatpush.msra.mxu0 %v188
        %402 = vmatpush.msra.mxu0 %v186
        %403 = vmatpush.msra.mxu0 %v184
        %404 = vmatpush.msra.mxu0 %v182
        %405 = vmatpush.msra.mxu0 %v180
        %406 = vmatpush.msra.mxu0 %v178
        %407 = vmatpush.msra.mxu0 %v176
        %408 = vmatpush.msra.mxu0 %v174
        %409 = vmatpush.msra.mxu0 %v172
        %410 = vmatmul.f32.gmra.mxu0 %v163
        %v411 = vpop.f32.mrf.mxu0
        %v412 = vadd.f32 %v352, %v411
        %413 = vdwg.mxu0
        %414 = vmatpush.msra.mxu0 %v234
        %415 = vmatpush.msra.mxu0 %v232
        %416 = vmatpush.msra.mxu0 %v230
        %417 = vmatpush.msra.mxu0 %v228
        %418 = vmatpush.msra.mxu0 %v226
        %419 = vmatpush.msra.mxu0 %v224
        %420 = vmatpush.msra.mxu0 %v222
        %421 = vmatpush.msra.mxu0 %v220
        %422 = vmatpush.msra.mxu0 %v218
        %423 = vmatpush.msra.mxu0 %v216
        %424 = vmatpush.msra.mxu0 %v214
        %425 = vmatpush.msra.mxu0 %v212
        %426 = vmatpush.msra.mxu0 %v210
        %427 = vmatpush.msra.mxu0 %v208
        %428 = vmatpush.msra.mxu0 %v206
        %429 = vmatpush.msra.mxu0 %v204
        %430 = vmatmul.f32.gmra.mxu0 %v166
        %v431 = vpop.f32.mrf.mxu0
        %v432 = vadd.f32 %v412, %v431
        %433 = vdwg.mxu0
        %434 = vmatpush.msra.mxu0 %v203
        %435 = vmatpush.msra.mxu0 %v201
        %436 = vmatpush.msra.mxu0 %v199
        %437 = vmatpush.msra.mxu0 %v197
        %438 = vmatpush.msra.mxu0 %v195
        %439 = vmatpush.msra.mxu0 %v193
        %440 = vmatpush.msra.mxu0 %v191
        %441 = vmatpush.msra.mxu0 %v189
        %442 = vmatpush.msra.mxu0 %v187
        %443 = vmatpush.msra.mxu0 %v185
        %444 = vmatpush.msra.mxu0 %v183
        %445 = vmatpush.msra.mxu0 %v181
        %446 = vmatpush.msra.mxu0 %v179
        %447 = vmatpush.msra.mxu0 %v177
        %448 = vmatpush.msra.mxu0 %v175
        %449 = vmatpush.msra.mxu0 %v173
        %450 = vmatmul.f32.gmra.mxu0 %v163
        %v451 = vpop.f32.mrf.mxu0
        %v452 = vadd.f32 %v392, %v451
        %453 = vdwg.mxu0
        %454 = vmatpush.msra.mxu0 %v235
        %455 = vmatpush.msra.mxu0 %v233
        %456 = vmatpush.msra.mxu0 %v231
        %457 = vmatpush.msra.mxu0 %v229
        %458 = vmatpush.msra.mxu0 %v227
        %459 = vmatpush.msra.mxu0 %v225
        %460 = vmatpush.msra.mxu0 %v223
        %461 = vmatpush.msra.mxu0 %v221
        %462 = vmatpush.msra.mxu0 %v219
        %463 = vmatpush.msra.mxu0 %v217
        %464 = vmatpush.msra.mxu0 %v215
        %465 = vmatpush.msra.mxu0 %v213
        %466 = vmatpush.msra.mxu0 %v211
        %467 = vmatpush.msra.mxu0 %v209
        %468 = vmatpush.msra.mxu0 %v207
        %469 = vmatpush.msra.mxu0 %v205
        %470 = vmatmul.f32.gmra.mxu0 %v166
        %v471 = vpop.f32.mrf.mxu0
        %v472 = vadd.f32 %v452, %v471
        %473 = vdwg.mxu0
        %s474 = sadd.s32 0, 2
        %s475 = smul.u32 %s474, 256
        %s476 = smul.u32 %s474, 2
        %s477 = sadd.s32 %s156, %s476
        %s478 = scalar_lea.vmem [#allocation3], %s477
        %v479 = vld [vmem:[%s478] sm:$0xff]
        %s480 = sadd.s32 %s477, 1
        %s481 = scalar_lea.vmem [#allocation3], %s480
        %v482 = vld [vmem:[%s481] sm:$0xff]
        %s483 = sshra.s32 %s475, 3
        %s484 = sand.u32 %s475, 7
        %s485 = smul.u32 %s483, 2
        %s486 = smul.addr %s485, 8
        %s487 = scalar_lea.vmem [#allocation6], %s486
        %v488 = vld [vmem:[%s487] sm:$0xff]
        %v489 = vld [vmem:[%s487 + $0x8] sm:$0xff]
        %v490 = vld [vmem:[%s487 + $0x10] sm:$0xff]
        %v491 = vld [vmem:[%s487 + $0x18] sm:$0xff]
        %v492 = vld [vmem:[%s487 + $0x20] sm:$0xff]
        %v493 = vld [vmem:[%s487 + $0x28] sm:$0xff]
        %v494 = vld [vmem:[%s487 + $0x30] sm:$0xff]
        %v495 = vld [vmem:[%s487 + $0x38] sm:$0xff]
        %v496 = vld [vmem:[%s487 + $0x40] sm:$0xff]
        %v497 = vld [vmem:[%s487 + $0x48] sm:$0xff]
        %v498 = vld [vmem:[%s487 + $0x50] sm:$0xff]
        %v499 = vld [vmem:[%s487 + $0x58] sm:$0xff]
        %v500 = vld [vmem:[%s487 + $0x60] sm:$0xff]
        %v501 = vld [vmem:[%s487 + $0x68] sm:$0xff]
        %v502 = vld [vmem:[%s487 + $0x70] sm:$0xff]
        %v503 = vld [vmem:[%s487 + $0x78] sm:$0xff]
        %v504 = vld [vmem:[%s487 + $0x80] sm:$0xff]
        %v505 = vld [vmem:[%s487 + $0x88] sm:$0xff]
        %v506 = vld [vmem:[%s487 + $0x90] sm:$0xff]
        %v507 = vld [vmem:[%s487 + $0x98] sm:$0xff]
        %v508 = vld [vmem:[%s487 + $0xa0] sm:$0xff]
        %v509 = vld [vmem:[%s487 + $0xa8] sm:$0xff]
        %v510 = vld [vmem:[%s487 + $0xb0] sm:$0xff]
        %v511 = vld [vmem:[%s487 + $0xb8] sm:$0xff]
        %v512 = vld [vmem:[%s487 + $0xc0] sm:$0xff]
        %v513 = vld [vmem:[%s487 + $0xc8] sm:$0xff]
        %v514 = vld [vmem:[%s487 + $0xd0] sm:$0xff]
        %v515 = vld [vmem:[%s487 + $0xd8] sm:$0xff]
        %v516 = vld [vmem:[%s487 + $0xe0] sm:$0xff]
        %v517 = vld [vmem:[%s487 + $0xe8] sm:$0xff]
        %v518 = vld [vmem:[%s487 + $0xf0] sm:$0xff]
        %v519 = vld [vmem:[%s487 + $0xf8] sm:$0xff]
        %v520 = vld [vmem:[%s487 + $0x100] sm:$0xff]
        %v521 = vld [vmem:[%s487 + $0x108] sm:$0xff]
        %v522 = vld [vmem:[%s487 + $0x110] sm:$0xff]
        %v523 = vld [vmem:[%s487 + $0x118] sm:$0xff]
        %v524 = vld [vmem:[%s487 + $0x120] sm:$0xff]
        %v525 = vld [vmem:[%s487 + $0x128] sm:$0xff]
        %v526 = vld [vmem:[%s487 + $0x130] sm:$0xff]
        %v527 = vld [vmem:[%s487 + $0x138] sm:$0xff]
        %v528 = vld [vmem:[%s487 + $0x140] sm:$0xff]
        %v529 = vld [vmem:[%s487 + $0x148] sm:$0xff]
        %v530 = vld [vmem:[%s487 + $0x150] sm:$0xff]
        %v531 = vld [vmem:[%s487 + $0x158] sm:$0xff]
        %v532 = vld [vmem:[%s487 + $0x160] sm:$0xff]
        %v533 = vld [vmem:[%s487 + $0x168] sm:$0xff]
        %v534 = vld [vmem:[%s487 + $0x170] sm:$0xff]
        %v535 = vld [vmem:[%s487 + $0x178] sm:$0xff]
        %v536 = vld [vmem:[%s487 + $0x180] sm:$0xff]
        %v537 = vld [vmem:[%s487 + $0x188] sm:$0xff]
        %v538 = vld [vmem:[%s487 + $0x190] sm:$0xff]
        %v539 = vld [vmem:[%s487 + $0x198] sm:$0xff]
        %v540 = vld [vmem:[%s487 + $0x1a0] sm:$0xff]
        %v541 = vld [vmem:[%s487 + $0x1a8] sm:$0xff]
        %v542 = vld [vmem:[%s487 + $0x1b0] sm:$0xff]
        %v543 = vld [vmem:[%s487 + $0x1b8] sm:$0xff]
        %v544 = vld [vmem:[%s487 + $0x1c0] sm:$0xff]
        %v545 = vld [vmem:[%s487 + $0x1c8] sm:$0xff]
        %v546 = vld [vmem:[%s487 + $0x1d0] sm:$0xff]
        %v547 = vld [vmem:[%s487 + $0x1d8] sm:$0xff]
        %v548 = vld [vmem:[%s487 + $0x1e0] sm:$0xff]
        %v549 = vld [vmem:[%s487 + $0x1e8] sm:$0xff]
        %v550 = vld [vmem:[%s487 + $0x1f0] sm:$0xff]
        %v551 = vld [vmem:[%s487 + $0x1f8] sm:$0xff]
        %552 = vmatpush.msra.mxu0 %v518
        %553 = vmatpush.msra.mxu0 %v516
        %554 = vmatpush.msra.mxu0 %v514
        %555 = vmatpush.msra.mxu0 %v512
        %556 = vmatpush.msra.mxu0 %v510
        %557 = vmatpush.msra.mxu0 %v508
        %558 = vmatpush.msra.mxu0 %v506
        %559 = vmatpush.msra.mxu0 %v504
        %560 = vmatpush.msra.mxu0 %v502
        %561 = vmatpush.msra.mxu0 %v500
        %562 = vmatpush.msra.mxu0 %v498
        %563 = vmatpush.msra.mxu0 %v496
        %564 = vmatpush.msra.mxu0 %v494
        %565 = vmatpush.msra.mxu0 %v492
        %566 = vmatpush.msra.mxu0 %v490
        %567 = vmatpush.msra.mxu0 %v488
        %568 = vmatmul.f32.gmra.mxu0 %v479
        %v569 = vpop.f32.mrf.mxu0
        %v570 = vadd.f32 0.0, %v569
        %571 = vdwg.mxu0
        %572 = vmatpush.msra.mxu0 %v550
        %573 = vmatpush.msra.mxu0 %v548
        %574 = vmatpush.msra.mxu0 %v546
        %575 = vmatpush.msra.mxu0 %v544
        %576 = vmatpush.msra.mxu0 %v542
        %577 = vmatpush.msra.mxu0 %v540
        %578 = vmatpush.msra.mxu0 %v538
        %579 = vmatpush.msra.mxu0 %v536
        %580 = vmatpush.msra.mxu0 %v534
        %581 = vmatpush.msra.mxu0 %v532
        %582 = vmatpush.msra.mxu0 %v530
        %583 = vmatpush.msra.mxu0 %v528
        %584 = vmatpush.msra.mxu0 %v526
        %585 = vmatpush.msra.mxu0 %v524
        %586 = vmatpush.msra.mxu0 %v522
        %587 = vmatpush.msra.mxu0 %v520
        %588 = vmatmul.f32.gmra.mxu0 %v482
        %v589 = vpop.f32.mrf.mxu0
        %v590 = vadd.f32 %v570, %v589
        %591 = vdwg.mxu0
        %592 = vmatpush.msra.mxu0 %v519
        %593 = vmatpush.msra.mxu0 %v517
        %594 = vmatpush.msra.mxu0 %v515
        %595 = vmatpush.msra.mxu0 %v513
        %596 = vmatpush.msra.mxu0 %v511
        %597 = vmatpush.msra.mxu0 %v509
        %598 = vmatpush.msra.mxu0 %v507
        %599 = vmatpush.msra.mxu0 %v505
        %600 = vmatpush.msra.mxu0 %v503
        %601 = vmatpush.msra.mxu0 %v501
        %602 = vmatpush.msra.mxu0 %v499
        %603 = vmatpush.msra.mxu0 %v497
        %604 = vmatpush.msra.mxu0 %v495
        %605 = vmatpush.msra.mxu0 %v493
        %606 = vmatpush.msra.mxu0 %v491
        %607 = vmatpush.msra.mxu0 %v489
        %608 = vmatmul.f32.gmra.mxu0 %v479
        %v609 = vpop.f32.mrf.mxu0
        %v610 = vadd.f32 0.0, %v609
        %611 = vdwg.mxu0
        %612 = vmatpush.msra.mxu0 %v551
        %613 = vmatpush.msra.mxu0 %v549
        %614 = vmatpush.msra.mxu0 %v547
        %615 = vmatpush.msra.mxu0 %v545
        %616 = vmatpush.msra.mxu0 %v543
        %617 = vmatpush.msra.mxu0 %v541
        %618 = vmatpush.msra.mxu0 %v539
        %619 = vmatpush.msra.mxu0 %v537
        %620 = vmatpush.msra.mxu0 %v535
        %621 = vmatpush.msra.mxu0 %v533
        %622 = vmatpush.msra.mxu0 %v531
        %623 = vmatpush.msra.mxu0 %v529
        %624 = vmatpush.msra.mxu0 %v527
        %625 = vmatpush.msra.mxu0 %v525
        %626 = vmatpush.msra.mxu0 %v523
        %627 = vmatpush.msra.mxu0 %v521
        %628 = vmatmul.f32.gmra.mxu0 %v482
        %v629 = vpop.f32.mrf.mxu0
        %v630 = vadd.f32 %v610, %v629
        %631 = vdwg.mxu0
        %v632 = vadd.f32 %v432, %v590
        %v633 = vadd.f32 %v472, %v630
        %s634 = sadd.s32 0, 3
        %s635 = smul.u32 %s634, 256
        %s636 = smul.u32 %s634, 2
        %s637 = sadd.s32 %s156, %s636
        %s638 = scalar_lea.vmem [#allocation3], %s637
        %v639 = vld [vmem:[%s638] sm:$0xff]
        %s640 = sadd.s32 %s637, 1
        %s641 = scalar_lea.vmem [#allocation3], %s640
        %v642 = vld [vmem:[%s641] sm:$0xff]
        %s643 = sshra.s32 %s635, 3
        %s644 = sand.u32 %s635, 7
        %s645 = smul.u32 %s643, 2
        %s646 = smul.addr %s645, 8
        %s647 = scalar_lea.vmem [#allocation6], %s646
        %v648 = vld [vmem:[%s647] sm:$0xff]
        %v649 = vld [vmem:[%s647 + $0x8] sm:$0xff]
        %v650 = vld [vmem:[%s647 + $0x10] sm:$0xff]
        %v651 = vld [vmem:[%s647 + $0x18] sm:$0xff]
        %v652 = vld [vmem:[%s647 + $0x20] sm:$0xff]
        %v653 = vld [vmem:[%s647 + $0x28] sm:$0xff]
        %v654 = vld [vmem:[%s647 + $0x30] sm:$0xff]
        %v655 = vld [vmem:[%s647 + $0x38] sm:$0xff]
        %v656 = vld [vmem:[%s647 + $0x40] sm:$0xff]
        %v657 = vld [vmem:[%s647 + $0x48] sm:$0xff]
        %v658 = vld [vmem:[%s647 + $0x50] sm:$0xff]
        %v659 = vld [vmem:[%s647 + $0x58] sm:$0xff]
        %v660 = vld [vmem:[%s647 + $0x60] sm:$0xff]
        %v661 = vld [vmem:[%s647 + $0x68] sm:$0xff]
        %v662 = vld [vmem:[%s647 + $0x70] sm:$0xff]
        %v663 = vld [vmem:[%s647 + $0x78] sm:$0xff]
        %v664 = vld [vmem:[%s647 + $0x80] sm:$0xff]
        %v665 = vld [vmem:[%s647 + $0x88] sm:$0xff]
        %v666 = vld [vmem:[%s647 + $0x90] sm:$0xff]
        %v667 = vld [vmem:[%s647 + $0x98] sm:$0xff]
        %v668 = vld [vmem:[%s647 + $0xa0] sm:$0xff]
        %v669 = vld [vmem:[%s647 + $0xa8] sm:$0xff]
        %v670 = vld [vmem:[%s647 + $0xb0] sm:$0xff]
        %v671 = vld [vmem:[%s647 + $0xb8] sm:$0xff]
        %v672 = vld [vmem:[%s647 + $0xc0] sm:$0xff]
        %v673 = vld [vmem:[%s647 + $0xc8] sm:$0xff]
        %v674 = vld [vmem:[%s647 + $0xd0] sm:$0xff]
        %v675 = vld [vmem:[%s647 + $0xd8] sm:$0xff]
        %v676 = vld [vmem:[%s647 + $0xe0] sm:$0xff]
        %v677 = vld [vmem:[%s647 + $0xe8] sm:$0xff]
        %v678 = vld [vmem:[%s647 + $0xf0] sm:$0xff]
        %v679 = vld [vmem:[%s647 + $0xf8] sm:$0xff]
        %v680 = vld [vmem:[%s647 + $0x100] sm:$0xff]
        %v681 = vld [vmem:[%s647 + $0x108] sm:$0xff]
        %v682 = vld [vmem:[%s647 + $0x110] sm:$0xff]
        %v683 = vld [vmem:[%s647 + $0x118] sm:$0xff]
        %v684 = vld [vmem:[%s647 + $0x120] sm:$0xff]
        %v685 = vld [vmem:[%s647 + $0x128] sm:$0xff]
        %v686 = vld [vmem:[%s647 + $0x130] sm:$0xff]
        %v687 = vld [vmem:[%s647 + $0x138] sm:$0xff]
        %v688 = vld [vmem:[%s647 + $0x140] sm:$0xff]
        %v689 = vld [vmem:[%s647 + $0x148] sm:$0xff]
        %v690 = vld [vmem:[%s647 + $0x150] sm:$0xff]
        %v691 = vld [vmem:[%s647 + $0x158] sm:$0xff]
        %v692 = vld [vmem:[%s647 + $0x160] sm:$0xff]
        %v693 = vld [vmem:[%s647 + $0x168] sm:$0xff]
        %v694 = vld [vmem:[%s647 + $0x170] sm:$0xff]
        %v695 = vld [vmem:[%s647 + $0x178] sm:$0xff]
        %v696 = vld [vmem:[%s647 + $0x180] sm:$0xff]
        %v697 = vld [vmem:[%s647 + $0x188] sm:$0xff]
        %v698 = vld [vmem:[%s647 + $0x190] sm:$0xff]
        %v699 = vld [vmem:[%s647 + $0x198] sm:$0xff]
        %v700 = vld [vmem:[%s647 + $0x1a0] sm:$0xff]
        %v701 = vld [vmem:[%s647 + $0x1a8] sm:$0xff]
        %v702 = vld [vmem:[%s647 + $0x1b0] sm:$0xff]
        %v703 = vld [vmem:[%s647 + $0x1b8] sm:$0xff]
        %v704 = vld [vmem:[%s647 + $0x1c0] sm:$0xff]
        %v705 = vld [vmem:[%s647 + $0x1c8] sm:$0xff]
        %v706 = vld [vmem:[%s647 + $0x1d0] sm:$0xff]
        %v707 = vld [vmem:[%s647 + $0x1d8] sm:$0xff]
        %v708 = vld [vmem:[%s647 + $0x1e0] sm:$0xff]
        %v709 = vld [vmem:[%s647 + $0x1e8] sm:$0xff]
        %v710 = vld [vmem:[%s647 + $0x1f0] sm:$0xff]
        %v711 = vld [vmem:[%s647 + $0x1f8] sm:$0xff]
        %712 = vmatpush.msra.mxu0 %v678
        %713 = vmatpush.msra.mxu0 %v676
        %714 = vmatpush.msra.mxu0 %v674
        %715 = vmatpush.msra.mxu0 %v672
        %716 = vmatpush.msra.mxu0 %v670
        %717 = vmatpush.msra.mxu0 %v668
        %718 = vmatpush.msra.mxu0 %v666
        %719 = vmatpush.msra.mxu0 %v664
        %720 = vmatpush.msra.mxu0 %v662
        %721 = vmatpush.msra.mxu0 %v660
        %722 = vmatpush.msra.mxu0 %v658
        %723 = vmatpush.msra.mxu0 %v656
        %724 = vmatpush.msra.mxu0 %v654
        %725 = vmatpush.msra.mxu0 %v652
        %726 = vmatpush.msra.mxu0 %v650
        %727 = vmatpush.msra.mxu0 %v648
        %728 = vmatmul.f32.gmra.mxu0 %v639
        %v729 = vpop.f32.mrf.mxu0
        %v730 = vadd.f32 0.0, %v729
        %731 = vdwg.mxu0
        %732 = vmatpush.msra.mxu0 %v710
        %733 = vmatpush.msra.mxu0 %v708
        %734 = vmatpush.msra.mxu0 %v706
        %735 = vmatpush.msra.mxu0 %v704
        %736 = vmatpush.msra.mxu0 %v702
        %737 = vmatpush.msra.mxu0 %v700
        %738 = vmatpush.msra.mxu0 %v698
        %739 = vmatpush.msra.mxu0 %v696
        %740 = vmatpush.msra.mxu0 %v694
        %741 = vmatpush.msra.mxu0 %v692
        %742 = vmatpush.msra.mxu0 %v690
        %743 = vmatpush.msra.mxu0 %v688
        %744 = vmatpush.msra.mxu0 %v686
        %745 = vmatpush.msra.mxu0 %v684
        %746 = vmatpush.msra.mxu0 %v682
        %747 = vmatpush.msra.mxu0 %v680
        %748 = vmatmul.f32.gmra.mxu0 %v642
        %v749 = vpop.f32.mrf.mxu0
        %v750 = vadd.f32 %v730, %v749
        %751 = vdwg.mxu0
        %752 = vmatpush.msra.mxu0 %v679
        %753 = vmatpush.msra.mxu0 %v677
        %754 = vmatpush.msra.mxu0 %v675
        %755 = vmatpush.msra.mxu0 %v673
        %756 = vmatpush.msra.mxu0 %v671
        %757 = vmatpush.msra.mxu0 %v669
        %758 = vmatpush.msra.mxu0 %v667
        %759 = vmatpush.msra.mxu0 %v665
        %760 = vmatpush.msra.mxu0 %v663
        %761 = vmatpush.msra.mxu0 %v661
        %762 = vmatpush.msra.mxu0 %v659
        %763 = vmatpush.msra.mxu0 %v657
        %764 = vmatpush.msra.mxu0 %v655
        %765 = vmatpush.msra.mxu0 %v653
        %766 = vmatpush.msra.mxu0 %v651
        %767 = vmatpush.msra.mxu0 %v649
        %768 = vmatmul.f32.gmra.mxu0 %v639
        %v769 = vpop.f32.mrf.mxu0
        %v770 = vadd.f32 0.0, %v769
        %771 = vdwg.mxu0
        %772 = vmatpush.msra.mxu0 %v711
        %773 = vmatpush.msra.mxu0 %v709
        %774 = vmatpush.msra.mxu0 %v707
        %775 = vmatpush.msra.mxu0 %v705
        %776 = vmatpush.msra.mxu0 %v703
        %777 = vmatpush.msra.mxu0 %v701
        %778 = vmatpush.msra.mxu0 %v699
        %779 = vmatpush.msra.mxu0 %v697
        %780 = vmatpush.msra.mxu0 %v695
        %781 = vmatpush.msra.mxu0 %v693
        %782 = vmatpush.msra.mxu0 %v691
        %783 = vmatpush.msra.mxu0 %v689
        %784 = vmatpush.msra.mxu0 %v687
        %785 = vmatpush.msra.mxu0 %v685
        %786 = vmatpush.msra.mxu0 %v683
        %787 = vmatpush.msra.mxu0 %v681
        %788 = vmatmul.f32.gmra.mxu0 %v642
        %v789 = vpop.f32.mrf.mxu0
        %v790 = vadd.f32 %v770, %v789
        %791 = vdwg.mxu0
        %v792 = vadd.f32 %v632, %v750
        %v793 = vadd.f32 %v633, %v790
        %v794 = vld [vmem:[#allocation2] sm:$0xff]
        %v795 = vld [vmem:[#allocation2 + $0x8] sm:$0xff]
        %v796 = vadd.f32 %v794, %v792
        %v797 = vadd.f32 %v795, %v793
        %798 = vst [vmem:[#allocation2] sm:$0xff] %v796
        %799 = vst [vmem:[#allocation2 + $0x8] sm:$0xff] %v797
        %v800 = vld [vmem:[#allocation2] sm:$0xff]
        %v801 = vld [vmem:[#allocation2 + $0x8] sm:$0xff]
        %v802 = vmul.f32 %v800, %v800
        %v803 = vmul.f32 %v801, %v801
        %v804 = vadd.f32 %v802, %v803
        %v805 = vrsqrt.pop %v804
        %v806 = vmul.f32 %v805, %v804
        %v807 = vmul.f32 %v806, %v805
        %v808 = vmul.f32 0.5, %v807
        %v809 = vsub.f32 1.5, %v808
        %v810 = vmul.f32 %v805, %v809
        %v811 = vmul.f32 %v804, %v810
        %vm812 = vcmp.eq.f32.partialorder %v804, inf
        %v813 = vsel %vm812, %v804, %v811
        %vm814 = vcmp.eq.f32.partialorder %v804, 0.0
        %v815 = vand.u32 %v804, 2147483648
        %v816 = vsel %vm814, %v815, %v813
        %v817 = vadd.f32 %v816, 1.0
        %v818 = vlog2.pop %v817
        %v819 = vmul.f32 %v818, 0.6931472
        %v820 = vmul.f32 -0.5, %v816
        %v821 = vadd.f32 %v820, 1.0
        %v822 = vmul.f32 %v821, %v816
        %v823 = vand.u32 2147483647, %v816
        %vm824 = vcmp.lt.f32.partialorder %v823, 0.0004427343
        %v825 = vsel %vm824, %v822, %v819
        %826 = vst [vmem:[%s155] sm:$0xff] %v825
        %s827 = sand.u32 %s68, 1
        %s828 = scalar_lea.sflag [#allocation5], %s827
        %s829 = sand.u32 %s68, 1
        %s830 = smul.addr %s829, 8
        %s831 = scalar_lea.vmem [#allocation8], %s830
        // Predicated region
        $region37: #{tpu_custom_call.1} parent=27 // pred_check
          %p832 = pneg %p78
        $region38: #{tpu_custom_call.1} parent=27 // pred_check_branch
          %834 = sbr.rel (%p832) target = $region40
        $region39: #{tpu_custom_call.1} parent=27 // pred_region
          %836 = vsyncadd %s828, 0
          %s837 = smul.addr %s18, 8
          %s838 = scalar_lea.hbm %s2, %s837
          %s840 = sshll.u32 %s831, 4
          %s841 = int_to_ptr.vmem [resolvable:$true] %s840
          %s842 = sshll.u32 %s838, 4
          %s843 = int_to_ptr.hbm [resolvable:$true] %s842
          %845 = dma.vmem_to_hbm [thread:$0]  %s841, 128, %s843, %s828
        $region40: #{tpu_custom_call.1} parent=27 // pred_fallthru
          _
      $region28: #{tpu_custom_call.1} parent=5 // pred_fallthru
        _
      %p846 = scmp.le.s32.totalorder 2, %s13
      // Predicated region
      $region41: #{tpu_custom_call.1} parent=5 // pred_check
        %p847 = pneg %p846
      $region42: #{tpu_custom_call.1} parent=5 // pred_check_branch
        %849 = sbr.rel (%p847) target = $region44
      $region43: #{tpu_custom_call.1} parent=5 // pred_region
        %s850 = ssub.s32 %s13, 2
        // Predicated region
        $region45: #{tpu_custom_call.1} parent=43 // pred_check
          %p851 = pneg %p84
        $region46: #{tpu_custom_call.1} parent=43 // pred_check_branch
          %853 = sbr.rel (%p851) target = $region48
        $region47: #{tpu_custom_call.1} parent=43 // pred_region
          %s854 = sand.u32 %s69, 1
          %s855 = scalar_lea.sflag [#allocation5], %s854
          %s856 = sand.u32 %s69, 1
          %s857 = smul.addr %s856, 8
          %s858 = scalar_lea.vmem [#allocation8], %s857
          %860 = dma.done %s855, 128
        $region48: #{tpu_custom_call.1} parent=43 // pred_fallthru
          _
      $region44: #{tpu_custom_call.1} parent=5 // pred_fallthru
        _
    $region6: #{tpu_custom_call.1} parent=1 // loop_footer
      %s17 = sadd.s32 1, %s13
    $region7: #{tpu_custom_call.1} parent=1 // loop_footer_branch
      %12 = sbr.rel target = $region3
    $region8: #{tpu_custom_call.1} parent=1 // loop_exit
      _
    %861 = vsyncpa [#allocation4], 1
    %s862 = scalar_lea.sflag [#allocation4], 1
    %863 = vsyncpa %s862, 1
    %864 = vsyncpa [#allocation7], 1
    %865 = vsyncpa [#allocation5], 1
    %s866 = scalar_lea.sflag [#allocation5], 1
    %867 = vsyncpa %s866, 1

</llo_original>
